<compile_context>
chip_gen: v7x
topology: tpu7x:2x2x1
jax: 0.10.0
libtpu: 0.0.40
codegen_flags: <defaults>
</compile_context>

<pallas_src>
from functools import partial

import jax
import jax.numpy as jnp
import numpy as np
from jax.experimental import pallas as pl
from jax.experimental.pallas import tpu as pltpu

_EPS = 1e-5


# ------------------------------ kernel helpers ------------------------------ #

def _erf(x):
    # Abramowitz & Stegun 7.1.26 (max abs err ~1.5e-7); the divide is done with
    # an approximate EUP reciprocal (extra ~2^-12 rel err, well within tol).
    a1, a2, a3, a4, a5 = (0.254829592, -0.284496736, 1.421413741,
                          -1.453152027, 1.061405429)
    p = 0.3275911
    ax = jnp.abs(x)
    t = pl.reciprocal(1.0 + p * ax, approx=True)
    poly = ((((a5 * t + a4) * t + a3) * t + a2) * t + a1) * t
    y = 1.0 - poly * jnp.exp(-ax * ax)
    return jnp.where(x >= 0, y, -y)


def _gelu_exact(x):
    # PyTorch nn.GELU() default (erf based, not tanh approximation).
    return 0.5 * x * (1.0 + _erf(x * 0.7071067811865476))


def _batchnorm(x, gamma, beta, d):
    # BatchNorm1d over the feature (last) axis with batch (training-mode)
    # statistics.  mean and E[x^2] come from ONE fused sublane reduction over
    # the lane-concatenated [x | x*x] slab (halves XLU reduce count).
    # NOTE: single-pass variance is cancellation-prone if |mean| >> std; fine
    # at this scale.
    stats = jnp.mean(jnp.concatenate([x, x * x], axis=-1), axis=0, keepdims=True)
    mean = stats[:, :d]
    var = stats[:, d:] - mean * mean
    return (x - mean) * jax.lax.rsqrt(var + _EPS) * gamma + beta


# ------------------------------ fused kernel -------------------------------- #

def _fused_kernel(src_ref, xall_ref, wk_ref, bk_ref, rbd_ref, msel_ref,
                  wo_ref, bo_ref, mbd_ref, bn1g_ref, bn1b_ref,
                  w1_ref, b1_ref, w2_ref, b2_ref, bn2g_ref, bn2b_ref,
                  o_ref, *, two_bs, seq_len, n_heads, d_compress,
                  d_model, d_model_attn, half_rows):
    f32 = jnp.float32

    # Shared W_K projection of BOTH stacked cross inputs (values == keys).
    k2d = jnp.dot(xall_ref[...], wk_ref[...],
                  preferred_element_type=f32) + bk_ref[...]   # [2bs*L, H*dk]
    k3 = k2d.reshape(two_bs, seq_len, d_model_attn)           # [2bs, L, H*dk]

    # Scores for all heads / both branches in ONE batched matmul.  rbd is the
    # block-diagonal router (softmax scale folded in), pre-broadcast to 2bs.
    s = jnp.einsum('bpd,bld->bpl', rbd_ref[...], k3,
                   preferred_element_type=f32)                # [2bs, H*dc, L]
    m = jnp.max(s, axis=-1, keepdims=True)
    e = jnp.exp(s - m)
    w = e * pl.reciprocal(jnp.sum(e, axis=-1, keepdims=True), approx=True)

    # Attention output over all (head, head') block pairs, then keep only the
    # matching-head blocks: mask multiply + sum of n_heads sublane slices.
    o_full = jnp.einsum('bpl,bld->bpd', w, k3,
                        preferred_element_type=f32)           # [2bs, H*dc, H*dk]
    o_full = o_full * msel_ref[...]
    o_hd = o_full[:, 0:d_compress, :]
    for hh in range(1, n_heads):
        o_hd = o_hd + o_full[:, hh * d_compress:(hh + 1) * d_compress, :]
    a_all = o_hd.reshape(two_bs * d_compress, d_model_attn)   # [2bs*dc, H*dk]
    a_in = a_all[:half_rows]                                  # 8-sublane aligned
    a_out = a_all[half_rows:]

    # torch.layer_norm(a_in * a_out, (d_model_attn,)) -- no affine, eps=1e-5.
    prod = a_in * a_out
    mu = jnp.mean(prod, axis=-1, keepdims=True)
    xc = prod - mu
    var = jnp.mean(xc * xc, axis=-1, keepdims=True)
    attn_router = xc * jax.lax.rsqrt(var + _EPS)

    # to_out projection; then src2 = blockdiag(m_expand) @ attn_router lands
    # directly in the [bs*d_share_corr*q_len, d_model] residual layout (no
    # broadcast / middle-axis reshape).
    ar = jnp.dot(attn_router, wo_ref[...],
                 preferred_element_type=f32) + bo_ref[...]    # [bs*dc, D]
    src2 = jnp.dot(mbd_ref[...], ar, preferred_element_type=f32)

    hid = src_ref[...] + src2                                 # dropout p=0
    hid = _batchnorm(hid, bn1g_ref[...], bn1b_ref[...], d_model)

    # Position-wise FFN + residual + norm_ffn.
    ff = jnp.dot(hid, w1_ref[...], preferred_element_type=f32) + b1_ref[...]
    ff = _gelu_exact(ff)
    ff = jnp.dot(ff, w2_ref[...], preferred_element_type=f32) + b2_ref[...]
    hid = _batchnorm(hid + ff, bn2g_ref[...], bn2b_ref[...], d_model)

    o_ref[...] = hid.astype(o_ref.dtype)


# --------------------------------- wrapper ---------------------------------- #

def mapped_tst_cross_encoder_layer(src, src_cross_in, src_cross_out, params, *,
                                   n_heads, d_compress):
    bs, dsc, q_len, d_model = src.shape
    L_in, L_out = src_cross_in.shape[1], src_cross_out.shape[1]
    # TODO(synk): unequal L_in/L_out (and key_padding_mask/attn_mask) would
    # need an additive score mask; not exercised by this forward.
    assert L_in == L_out, "merged-branch kernel assumes L_in == L_out"
    L = L_in
    d_k = d_model // n_heads
    d_model_attn = d_k * n_heads
    scale = d_k ** (-0.5)                       # lsa=False -> constant scale
    rows = bs * dsc * q_len
    two_bs = 2 * bs
    half_rows = bs * d_compress
    f32 = jnp.float32

    # ---- host-side prep (tiny constants; fused/folded by XLA) ----
    # Stack both cross inputs along the batch axis -> one W_K / one attention.
    xall = jnp.concatenate(
        [src_cross_in.reshape(bs * L, d_model),
         src_cross_out.reshape(bs * L, d_model)], axis=0)

    # Block-diagonal router with the softmax scale folded in:
    #   rbd[h*dc + c, g*dk + d] = (h == g) * router[h, c, d] * scale
    router = params['router'].reshape(n_heads, d_compress, d_k).astype(f32)
    rbd = jnp.einsum('hg,hcd->hcgd', jnp.eye(n_heads, dtype=f32),
                     router * scale).reshape(n_heads * d_compress, d_model_attn)
    rbd_b = jnp.broadcast_to(rbd[None], (two_bs,) + rbd.shape)

    # Head-match mask: msel[p, q] = 1 iff p // dc == q // dk.
    p_head = jnp.repeat(jnp.arange(n_heads), d_compress)
    q_head = jnp.repeat(jnp.arange(n_heads), d_k)
    msel = (p_head[:, None] == q_head[None, :]).astype(f32)
    msel_b = jnp.broadcast_to(msel[None], (two_bs,) + msel.shape)

    # Block-diagonal m_expand tiled over d_share_corr:
    #   mbd[(b, s, q), (b', c)] = (b == b') * m_expand[q, c]
    m2 = params['m_expand'].reshape(q_len, d_compress).astype(f32)
    m_tiled = jnp.tile(m2, (dsc, 1))                          # [dsc*q_len, dc]
    mbd = jnp.einsum('ij,rc->irjc', jnp.eye(bs, dtype=f32),
                     m_tiled).reshape(rows, bs * d_compress)

    inputs = [
        src.reshape(rows, d_model),
        xall,
        params['wk'], params['bk'].reshape(1, d_model_attn),
        rbd_b, msel_b,
        params['wo'], params['bo'].reshape(1, d_model),
        mbd,
        params['bn1_g'].reshape(1, d_model), params['bn1_b'].reshape(1, d_model),
        params['w1'], params['b1'].reshape(1, -1),
        params['w2'], params['b2'].reshape(1, d_model),
        params['bn2_g'].reshape(1, d_model), params['bn2_b'].reshape(1, d_model),
    ]

    def _full_spec(shape):
        zeros = (0,) * len(shape)
        return pl.BlockSpec(shape, lambda i, _z=zeros: _z)

    kern = partial(_fused_kernel, two_bs=two_bs, seq_len=L, n_heads=n_heads,
                   d_compress=d_compress, d_model=d_model,
                   d_model_attn=d_model_attn, half_rows=half_rows)

    # NOTE: output stays in the natural [rows, d_model]=[64,32] layout (masked
    # lane stores); the lane-dense repack requires a sublane->lane relayout
    # whose lowering risk outweighs ~45 KiB of store traffic at this size.
    out = pl.pallas_call(
        kern,
        out_shape=jax.ShapeDtypeStruct((rows, d_model), jnp.float32),
        grid=(1,),
        in_specs=[_full_spec(tuple(x.shape)) for x in inputs],
        out_specs=pl.BlockSpec((rows, d_model), lambda i: (0, 0)),
        compiler_params=pltpu.CompilerParams(
            dimension_semantics=("arbitrary",)),
    )(*inputs)
    return out.reshape(bs, dsc, q_len, d_model)


# --------------------------- pure-JAX reference ----------------------------- #

def reference_forward(src, src_cross_in, src_cross_out, params, *,
                      n_heads, d_compress):
    hp = jax.lax.Precision.HIGHEST
    bs, dsc, q_len, d_model = src.shape
    d_k = d_model // n_heads
    d_model_attn = n_heads * d_k
    scale = d_k ** (-0.5)

    def proj_k(x):
        k = jnp.einsum('bld,de->ble', x, params['wk'], precision=hp) + params['bk']
        return k.reshape(bs, -1, n_heads, d_k).transpose(0, 2, 3, 1)  # [b,H,dk,L]

    q_s = jnp.broadcast_to(params['router'], (bs, n_heads, d_compress, d_k))

    def branch(x):
        k_s = proj_k(x)
        v_s = jnp.swapaxes(k_s, 3, 2)
        s = jnp.einsum('bhcd,bhdl->bhcl', q_s, k_s, precision=hp) * scale
        w = jax.nn.softmax(s, axis=-1)
        o = jnp.einsum('bhcl,bhld->bhcd', w, v_s, precision=hp)
        return o.transpose(0, 2, 1, 3).reshape(bs, d_compress, d_model_attn)

    prod = branch(src_cross_in) * branch(src_cross_out)
    mu = prod.mean(-1, keepdims=True)
    var = ((prod - mu) ** 2).mean(-1, keepdims=True)
    ar = (prod - mu) / jnp.sqrt(var + _EPS)
    ar = jnp.einsum('bcd,de->bce', ar, params['wo'], precision=hp) + params['bo']
    src2 = jnp.einsum('qc,bcd->bqd',
                      params['m_expand'].reshape(q_len, d_compress), ar,
                      precision=hp)
    h = (src + src2[:, None, :, :]).reshape(bs * dsc * q_len, d_model)

    def bn(x, g, b):
        m = x.mean(0, keepdims=True)
        v = ((x - m) ** 2).mean(0, keepdims=True)
        return (x - m) / jnp.sqrt(v + _EPS) * g + b

    h = bn(h, params['bn1_g'], params['bn1_b'])
    ff = jnp.einsum('md,df->mf', h, params['w1'], precision=hp) + params['b1']
    ff = jax.nn.gelu(ff, approximate=False)
    ff = jnp.einsum('mf,fd->md', ff, params['w2'], precision=hp) + params['b2']
    h = bn(h + ff, params['bn2_g'], params['bn2_b'])
    return h.reshape(bs, dsc, q_len, d_model)


# ----------------------------------- main ------------------------------------ #

if __name__ == "__main__":
    bs, d_share_corr, q_len = 2, 4, 8
    L_in, L_out = 16, 16
    d_model, n_heads = 32, 4
    d_compress, d_ff = 4, 64
    d_k = d_model // n_heads
    d_model_attn = d_k * n_heads

    key = jax.random.PRNGKey(0)
    ks = jax.random.split(key, 16)

    def rnd(k, shape, s=0.1):
        return (s * jax.random.normal(k, shape)).astype(jnp.float32)

    params = {
        'wk': rnd(ks[0], (d_model, d_model_attn)),
        'bk': rnd(ks[1], (d_model_attn,), 0.05),
        'wo': rnd(ks[2], (d_model_attn, d_model)),
        'bo': rnd(ks[3], (d_model,), 0.05),
        'router': jax.random.normal(ks[4], (1, n_heads, d_compress, d_k)).astype(jnp.float32),
        'm_expand': jax.random.normal(ks[5], (1, q_len, d_compress)).astype(jnp.float32),
        'bn1_g': jnp.ones((d_model,), jnp.float32),
        'bn1_b': jnp.zeros((d_model,), jnp.float32),
        'bn2_g': jnp.ones((d_model,), jnp.float32),
        'bn2_b': jnp.zeros((d_model,), jnp.float32),
        'w1': rnd(ks[6], (d_model, d_ff)), 'b1': rnd(ks[7], (d_ff,), 0.05),
        'w2': rnd(ks[8], (d_ff, d_model)), 'b2': rnd(ks[9], (d_model,), 0.05),
    }

    src = jax.random.normal(ks[10], (bs, d_share_corr, q_len, d_model)).astype(jnp.float32)
    src_cross_in = jax.random.normal(ks[11], (bs, L_in, d_model)).astype(jnp.float32)
    src_cross_out = jax.random.normal(ks[12], (bs, L_out, d_model)).astype(jnp.float32)

    fwd = jax.jit(partial(mapped_tst_cross_encoder_layer,
                          n_heads=n_heads, d_compress=d_compress))
    out = fwd(src, src_cross_in, src_cross_out, params)
    jax.block_until_ready(out)

    assert out.shape == (bs, d_share_corr, q_len, d_model)
    assert bool(jnp.all(jnp.isfinite(out)))

    # Correctness check against a pure-JAX reference.  Tolerance is loose to
    # cover the EUP approximate reciprocals (softmax denom + erf divide), the
    # erf polynomial and the one-pass variance; any structural/indexing bug
    # would be >> 1e-2.
    ref = reference_forward(src, src_cross_in, src_cross_out, params,
                            n_heads=n_heads, d_compress=d_compress)
    np.testing.assert_allclose(np.asarray(out), np.asarray(ref),
                               rtol=1e-2, atol=1e-2)

    print("KERNEL_OK")
</pallas_src>

<mosaic_0001>
module attributes {stable_mosaic.version = 11 : i64} {
  func.func @_fused_kernel(%arg0: i32, %arg1: memref<64x32xf32, #tpu.memory_space<vmem>>, %arg2: memref<64x32xf32, #tpu.memory_space<vmem>>, %arg3: memref<32x32xf32, #tpu.memory_space<vmem>>, %arg4: memref<1x32xf32, #tpu.memory_space<vmem>>, %arg5: memref<4x16x32xf32, #tpu.memory_space<vmem>>, %arg6: memref<4x16x32xf32, #tpu.memory_space<vmem>>, %arg7: memref<32x32xf32, #tpu.memory_space<vmem>>, %arg8: memref<1x32xf32, #tpu.memory_space<vmem>>, %arg9: memref<64x8xf32, #tpu.memory_space<vmem>>, %arg10: memref<1x32xf32, #tpu.memory_space<vmem>>, %arg11: memref<1x32xf32, #tpu.memory_space<vmem>>, %arg12: memref<32x64xf32, #tpu.memory_space<vmem>>, %arg13: memref<1x64xf32, #tpu.memory_space<vmem>>, %arg14: memref<64x32xf32, #tpu.memory_space<vmem>>, %arg15: memref<1x32xf32, #tpu.memory_space<vmem>>, %arg16: memref<1x32xf32, #tpu.memory_space<vmem>>, %arg17: memref<1x32xf32, #tpu.memory_space<vmem>>, %arg18: memref<64x32xf32, #tpu.memory_space<vmem>>) attributes {dimension_semantics = [#tpu.dimension_semantics<arbitrary>], iteration_bounds = array<i64: 1>, scalar_prefetch = 0 : i64, scratch_operands = 0 : i64, tpu.core_type = #tpu.core_type<tc>, window_params = [{pipeline_mode = #tpu.pipeline_mode<synchronous>, transform_indices = @transform_0, window_bounds = array<i64: 64, 32>}, {pipeline_mode = #tpu.pipeline_mode<synchronous>, transform_indices = @transform_1, window_bounds = array<i64: 64, 32>}, {pipeline_mode = #tpu.pipeline_mode<synchronous>, transform_indices = @transform_2, window_bounds = array<i64: 32, 32>}, {pipeline_mode = #tpu.pipeline_mode<synchronous>, transform_indices = @transform_3, window_bounds = array<i64: 1, 32>}, {pipeline_mode = #tpu.pipeline_mode<synchronous>, transform_indices = @transform_4, window_bounds = array<i64: 4, 16, 32>}, {pipeline_mode = #tpu.pipeline_mode<synchronous>, transform_indices = @transform_5, window_bounds = array<i64: 4, 16, 32>}, {pipeline_mode = #tpu.pipeline_mode<synchronous>, transform_indices = @transform_6, window_bounds = array<i64: 32, 32>}, {pipeline_mode = #tpu.pipeline_mode<synchronous>, transform_indices = @transform_7, window_bounds = array<i64: 1, 32>}, {pipeline_mode = #tpu.pipeline_mode<synchronous>, transform_indices = @transform_8, window_bounds = array<i64: 64, 8>}, {pipeline_mode = #tpu.pipeline_mode<synchronous>, transform_indices = @transform_9, window_bounds = array<i64: 1, 32>}, {pipeline_mode = #tpu.pipeline_mode<synchronous>, transform_indices = @transform_10, window_bounds = array<i64: 1, 32>}, {pipeline_mode = #tpu.pipeline_mode<synchronous>, transform_indices = @transform_11, window_bounds = array<i64: 32, 64>}, {pipeline_mode = #tpu.pipeline_mode<synchronous>, transform_indices = @transform_12, window_bounds = array<i64: 1, 64>}, {pipeline_mode = #tpu.pipeline_mode<synchronous>, transform_indices = @transform_13, window_bounds = array<i64: 64, 32>}, {pipeline_mode = #tpu.pipeline_mode<synchronous>, transform_indices = @transform_14, window_bounds = array<i64: 1, 32>}, {pipeline_mode = #tpu.pipeline_mode<synchronous>, transform_indices = @transform_15, window_bounds = array<i64: 1, 32>}, {pipeline_mode = #tpu.pipeline_mode<synchronous>, transform_indices = @transform_16, window_bounds = array<i64: 1, 32>}, {pipeline_mode = #tpu.pipeline_mode<synchronous>, transform_indices = @transform_17, window_bounds = array<i64: 64, 32>}]} {
    %c0 = arith.constant 0 : index
    %c0_0 = arith.constant 0 : index
    %0 = vector.load %arg2[%c0, %c0_0] : memref<64x32xf32, #tpu.memory_space<vmem>>, vector<64x32xf32>
    %c0_1 = arith.constant 0 : index
    %c0_2 = arith.constant 0 : index
    %1 = vector.load %arg3[%c0_1, %c0_2] : memref<32x32xf32, #tpu.memory_space<vmem>>, vector<32x32xf32>
    %cst = arith.constant dense<0.000000e+00> : vector<64x32xf32>
    %2 = tpu.matmul %0, %1, %cst {dimension_numbers = #tpu.dot_dimension_numbers<[1], [0], [0], [1], [0, 0, 1, 1], [], []>} : vector<64x32xf32>, vector<32x32xf32>, vector<64x32xf32> -> vector<64x32xf32>
    %c0_3 = arith.constant 0 : index
    %c0_4 = arith.constant 0 : index
    %3 = vector.load %arg4[%c0_3, %c0_4] : memref<1x32xf32, #tpu.memory_space<vmem>>, vector<1x32xf32>
    %4 = vector.broadcast %3 : vector<1x32xf32> to vector<64x32xf32>
    %5 = arith.addf %2, %4 : vector<64x32xf32>
    %6 = vector.shape_cast %5 : vector<64x32xf32> to vector<4x16x32xf32>
    %c0_5 = arith.constant 0 : index
    %c0_6 = arith.constant 0 : index
    %c0_7 = arith.constant 0 : index
    %7 = vector.load %arg5[%c0_5, %c0_6, %c0_7] : memref<4x16x32xf32, #tpu.memory_space<vmem>>, vector<4x16x32xf32>
    "tpu.trace_start"() <{level = 10 : i32, message = "bpd,bld->bpl"}> : () -> ()
    %cst_8 = arith.constant dense<0.000000e+00> : vector<4x16x16xf32>
    %8 = tpu.matmul %7, %6, %cst_8 {dimension_numbers = #tpu.dot_dimension_numbers<[2], [2], [1], [1], [0, 0, 0, 1, 1, 1], [0], [0]>} : vector<4x16x32xf32>, vector<4x16x32xf32>, vector<4x16x16xf32> -> vector<4x16x16xf32>
    "tpu.trace_stop"() : () -> ()
    %cst_9 = arith.constant dense<0xFF800000> : vector<4x16xf32>
    %9 = vector.multi_reduction <maximumf>, %8, %cst_9 [2] : vector<4x16x16xf32> to vector<4x16xf32>
    %10 = vector.shape_cast %9 : vector<4x16xf32> to vector<4x16x1xf32>
    %11 = vector.broadcast %10 : vector<4x16x1xf32> to vector<4x16x16xf32>
    %12 = arith.subf %8, %11 : vector<4x16x16xf32>
    %13 = math.exp %12 : vector<4x16x16xf32>
    %cst_10 = arith.constant dense<0.000000e+00> : vector<4x16xf32>
    %14 = vector.multi_reduction <add>, %13, %cst_10 [2] : vector<4x16x16xf32> to vector<4x16xf32>
    %15 = vector.shape_cast %14 : vector<4x16xf32> to vector<4x16x1xf32>
    %16 = tpu.reciprocal %15 {approx = true} : vector<4x16x1xf32> -> vector<4x16x1xf32>
    %17 = vector.broadcast %16 : vector<4x16x1xf32> to vector<4x16x16xf32>
    %18 = arith.mulf %13, %17 : vector<4x16x16xf32>
    "tpu.trace_start"() <{level = 10 : i32, message = "bpl,bld->bpd"}> : () -> ()
    %cst_11 = arith.constant dense<0.000000e+00> : vector<4x16x32xf32>
    %19 = tpu.matmul %18, %6, %cst_11 {dimension_numbers = #tpu.dot_dimension_numbers<[2], [1], [1], [2], [0, 0, 0, 1, 1, 2], [0], [0]>} : vector<4x16x16xf32>, vector<4x16x32xf32>, vector<4x16x32xf32> -> vector<4x16x32xf32>
    "tpu.trace_stop"() : () -> ()
    %c0_12 = arith.constant 0 : index
    %c0_13 = arith.constant 0 : index
    %c0_14 = arith.constant 0 : index
    %20 = vector.load %arg6[%c0_12, %c0_13, %c0_14] : memref<4x16x32xf32, #tpu.memory_space<vmem>>, vector<4x16x32xf32>
    %21 = arith.mulf %19, %20 : vector<4x16x32xf32>
    %22 = vector.extract_strided_slice %21 {offsets = [0, 0, 0], sizes = [4, 4, 32], strides = [1, 1, 1]} : vector<4x16x32xf32> to vector<4x4x32xf32>
    %23 = vector.extract_strided_slice %21 {offsets = [0, 4, 0], sizes = [4, 4, 32], strides = [1, 1, 1]} : vector<4x16x32xf32> to vector<4x4x32xf32>
    %24 = arith.addf %22, %23 : vector<4x4x32xf32>
    %25 = vector.extract_strided_slice %21 {offsets = [0, 8, 0], sizes = [4, 4, 32], strides = [1, 1, 1]} : vector<4x16x32xf32> to vector<4x4x32xf32>
    %26 = arith.addf %24, %25 : vector<4x4x32xf32>
    %27 = vector.extract_strided_slice %21 {offsets = [0, 12, 0], sizes = [4, 4, 32], strides = [1, 1, 1]} : vector<4x16x32xf32> to vector<4x4x32xf32>
    %28 = arith.addf %26, %27 : vector<4x4x32xf32>
    %29 = vector.shape_cast %28 : vector<4x4x32xf32> to vector<16x32xf32>
    %30 = vector.extract_strided_slice %29 {offsets = [0, 0], sizes = [8, 32], strides = [1, 1]} : vector<16x32xf32> to vector<8x32xf32>
    %31 = vector.extract_strided_slice %29 {offsets = [8, 0], sizes = [8, 32], strides = [1, 1]} : vector<16x32xf32> to vector<8x32xf32>
    %32 = arith.mulf %30, %31 : vector<8x32xf32>
    %cst_15 = arith.constant dense<0.000000e+00> : vector<8xf32>
    %33 = vector.multi_reduction <add>, %32, %cst_15 [1] : vector<8x32xf32> to vector<8xf32>
    %34 = vector.shape_cast %33 : vector<8xf32> to vector<8x1xf32>
    %cst_16 = arith.constant 3.200000e+01 : f32
    %35 = vector.broadcast %cst_16 : f32 to vector<8x1xf32>
    %36 = arith.divf %34, %35 : vector<8x1xf32>
    %37 = vector.broadcast %36 : vector<8x1xf32> to vector<8x32xf32>
    %38 = arith.subf %32, %37 : vector<8x32xf32>
    %39 = arith.mulf %38, %38 : vector<8x32xf32>
    %cst_17 = arith.constant dense<0.000000e+00> : vector<8xf32>
    %40 = vector.multi_reduction <add>, %39, %cst_17 [1] : vector<8x32xf32> to vector<8xf32>
    %41 = vector.shape_cast %40 : vector<8xf32> to vector<8x1xf32>
    %cst_18 = arith.constant 3.200000e+01 : f32
    %42 = vector.broadcast %cst_18 : f32 to vector<8x1xf32>
    %43 = arith.divf %41, %42 : vector<8x1xf32>
    %cst_19 = arith.constant 9.99999974E-6 : f32
    %44 = vector.broadcast %cst_19 : f32 to vector<8x1xf32>
    %45 = arith.addf %43, %44 : vector<8x1xf32>
    %46 = math.rsqrt %45 : vector<8x1xf32>
    %47 = vector.broadcast %46 : vector<8x1xf32> to vector<8x32xf32>
    %48 = arith.mulf %38, %47 : vector<8x32xf32>
    %c0_20 = arith.constant 0 : index
    %c0_21 = arith.constant 0 : index
    %49 = vector.load %arg7[%c0_20, %c0_21] : memref<32x32xf32, #tpu.memory_space<vmem>>, vector<32x32xf32>
    %cst_22 = arith.constant dense<0.000000e+00> : vector<8x32xf32>
    %50 = tpu.matmul %48, %49, %cst_22 {dimension_numbers = #tpu.dot_dimension_numbers<[1], [0], [0], [1], [0, 0, 1, 1], [], []>} : vector<8x32xf32>, vector<32x32xf32>, vector<8x32xf32> -> vector<8x32xf32>
    %c0_23 = arith.constant 0 : index
    %c0_24 = arith.constant 0 : index
    %51 = vector.load %arg8[%c0_23, %c0_24] : memref<1x32xf32, #tpu.memory_space<vmem>>, vector<1x32xf32>
    %52 = vector.broadcast %51 : vector<1x32xf32> to vector<8x32xf32>
    %53 = arith.addf %50, %52 : vector<8x32xf32>
    %c0_25 = arith.constant 0 : index
    %c0_26 = arith.constant 0 : index
    %54 = vector.load %arg9[%c0_25, %c0_26] : memref<64x8xf32, #tpu.memory_space<vmem>>, vector<64x8xf32>
    %cst_27 = arith.constant dense<0.000000e+00> : vector<64x32xf32>
    %55 = tpu.matmul %54, %53, %cst_27 {dimension_numbers = #tpu.dot_dimension_numbers<[1], [0], [0], [1], [0, 0, 1, 1], [], []>} : vector<64x8xf32>, vector<8x32xf32>, vector<64x32xf32> -> vector<64x32xf32>
    %c0_28 = arith.constant 0 : index
    %c0_29 = arith.constant 0 : index
    %56 = vector.load %arg1[%c0_28, %c0_29] : memref<64x32xf32, #tpu.memory_space<vmem>>, vector<64x32xf32>
    %57 = arith.addf %56, %55 : vector<64x32xf32>
    %c0_30 = arith.constant 0 : index
    %c0_31 = arith.constant 0 : index
    %58 = vector.load %arg10[%c0_30, %c0_31] : memref<1x32xf32, #tpu.memory_space<vmem>>, vector<1x32xf32>
    %c0_32 = arith.constant 0 : index
    %c0_33 = arith.constant 0 : index
    %59 = vector.load %arg11[%c0_32, %c0_33] : memref<1x32xf32, #tpu.memory_space<vmem>>, vector<1x32xf32>
    %60 = arith.mulf %57, %57 : vector<64x32xf32>
    %61 = tpu.concatenate %57, %60 in 1 : vector<64x32xf32>, vector<64x32xf32> -> vector<64x64xf32>
    %cst_34 = arith.constant dense<0.000000e+00> : vector<64xf32>
    %62 = vector.multi_reduction <add>, %61, %cst_34 [0] : vector<64x64xf32> to vector<64xf32>
    %63 = vector.shape_cast %62 : vector<64xf32> to vector<1x64xf32>
    %cst_35 = arith.constant 6.400000e+01 : f32
    %64 = vector.broadcast %cst_35 : f32 to vector<1x64xf32>
    %65 = arith.divf %63, %64 : vector<1x64xf32>
    %66 = vector.extract_strided_slice %65 {offsets = [0, 0], sizes = [1, 32], strides = [1, 1]} : vector<1x64xf32> to vector<1x32xf32>
    %67 = vector.extract_strided_slice %65 {offsets = [0, 32], sizes = [1, 32], strides = [1, 1]} : vector<1x64xf32> to vector<1x32xf32>
    %68 = arith.mulf %66, %66 : vector<1x32xf32>
    %69 = arith.subf %67, %68 : vector<1x32xf32>
    %70 = vector.broadcast %66 : vector<1x32xf32> to vector<64x32xf32>
    %71 = arith.subf %57, %70 : vector<64x32xf32>
    %cst_36 = arith.constant 9.99999974E-6 : f32
    %72 = vector.broadcast %cst_36 : f32 to vector<1x32xf32>
    %73 = arith.addf %69, %72 : vector<1x32xf32>
    %74 = math.rsqrt %73 : vector<1x32xf32>
    %75 = vector.broadcast %74 : vector<1x32xf32> to vector<64x32xf32>
    %76 = arith.mulf %71, %75 : vector<64x32xf32>
    %77 = vector.broadcast %58 : vector<1x32xf32> to vector<64x32xf32>
    %78 = arith.mulf %76, %77 : vector<64x32xf32>
    %79 = vector.broadcast %59 : vector<1x32xf32> to vector<64x32xf32>
    %80 = arith.addf %78, %79 : vector<64x32xf32>
    %c0_37 = arith.constant 0 : index
    %c0_38 = arith.constant 0 : index
    %81 = vector.load %arg12[%c0_37, %c0_38] : memref<32x64xf32, #tpu.memory_space<vmem>>, vector<32x64xf32>
    %cst_39 = arith.constant dense<0.000000e+00> : vector<64x64xf32>
    %82 = tpu.matmul %80, %81, %cst_39 {dimension_numbers = #tpu.dot_dimension_numbers<[1], [0], [0], [1], [0, 0, 1, 1], [], []>} : vector<64x32xf32>, vector<32x64xf32>, vector<64x64xf32> -> vector<64x64xf32>
    %c0_40 = arith.constant 0 : index
    %c0_41 = arith.constant 0 : index
    %83 = vector.load %arg13[%c0_40, %c0_41] : memref<1x64xf32, #tpu.memory_space<vmem>>, vector<1x64xf32>
    %84 = vector.broadcast %83 : vector<1x64xf32> to vector<64x64xf32>
    %85 = arith.addf %82, %84 : vector<64x64xf32>
    %cst_42 = arith.constant 5.000000e-01 : f32
    %86 = vector.broadcast %cst_42 : f32 to vector<64x64xf32>
    %87 = arith.mulf %86, %85 : vector<64x64xf32>
    %cst_43 = arith.constant 0.707106769 : f32
    %88 = vector.broadcast %cst_43 : f32 to vector<64x64xf32>
    %89 = arith.mulf %85, %88 : vector<64x64xf32>
    %90 = math.absf %89 : vector<64x64xf32>
    %cst_44 = arith.constant 0.327591091 : f32
    %91 = vector.broadcast %cst_44 : f32 to vector<64x64xf32>
    %92 = arith.mulf %91, %90 : vector<64x64xf32>
    %cst_45 = arith.constant 1.000000e+00 : f32
    %93 = vector.broadcast %cst_45 : f32 to vector<64x64xf32>
    %94 = arith.addf %93, %92 : vector<64x64xf32>
    %95 = tpu.reciprocal %94 {approx = true} : vector<64x64xf32> -> vector<64x64xf32>
    %cst_46 = arith.constant 1.06140542 : f32
    %96 = vector.broadcast %cst_46 : f32 to vector<64x64xf32>
    %97 = arith.mulf %96, %95 : vector<64x64xf32>
    %cst_47 = arith.constant -1.45315206 : f32
    %98 = vector.broadcast %cst_47 : f32 to vector<64x64xf32>
    %99 = arith.addf %97, %98 : vector<64x64xf32>
    %100 = arith.mulf %99, %95 : vector<64x64xf32>
    %cst_48 = arith.constant 1.42141378 : f32
    %101 = vector.broadcast %cst_48 : f32 to vector<64x64xf32>
    %102 = arith.addf %100, %101 : vector<64x64xf32>
    %103 = arith.mulf %102, %95 : vector<64x64xf32>
    %cst_49 = arith.constant -0.284496725 : f32
    %104 = vector.broadcast %cst_49 : f32 to vector<64x64xf32>
    %105 = arith.addf %103, %104 : vector<64x64xf32>
    %106 = arith.mulf %105, %95 : vector<64x64xf32>
    %cst_50 = arith.constant 0.254829586 : f32
    %107 = vector.broadcast %cst_50 : f32 to vector<64x64xf32>
    %108 = arith.addf %106, %107 : vector<64x64xf32>
    %109 = arith.mulf %108, %95 : vector<64x64xf32>
    %cst_51 = arith.constant 0.000000e+00 : f32
    %110 = vector.broadcast %cst_51 : f32 to vector<64x64xf32>
    %111 = arith.subf %110, %90 : vector<64x64xf32>
    %112 = arith.mulf %111, %90 : vector<64x64xf32>
    %113 = math.exp %112 : vector<64x64xf32>
    %114 = arith.mulf %109, %113 : vector<64x64xf32>
    %cst_52 = arith.constant 1.000000e+00 : f32
    %115 = vector.broadcast %cst_52 : f32 to vector<64x64xf32>
    %116 = arith.subf %115, %114 : vector<64x64xf32>
    %cst_53 = arith.constant 0.000000e+00 : f32
    %117 = vector.broadcast %cst_53 : f32 to vector<64x64xf32>
    %118 = arith.cmpf oge, %89, %117 : vector<64x64xf32>
    %cst_54 = arith.constant 0.000000e+00 : f32
    %119 = vector.broadcast %cst_54 : f32 to vector<64x64xf32>
    %120 = arith.subf %119, %116 : vector<64x64xf32>
    %121 = arith.select %118, %116, %120 : vector<64x64xi1>, vector<64x64xf32>
    %cst_55 = arith.constant 1.000000e+00 : f32
    %122 = vector.broadcast %cst_55 : f32 to vector<64x64xf32>
    %123 = arith.addf %122, %121 : vector<64x64xf32>
    %124 = arith.mulf %87, %123 : vector<64x64xf32>
    %c0_56 = arith.constant 0 : index
    %c0_57 = arith.constant 0 : index
    %125 = vector.load %arg14[%c0_56, %c0_57] : memref<64x32xf32, #tpu.memory_space<vmem>>, vector<64x32xf32>
    %cst_58 = arith.constant dense<0.000000e+00> : vector<64x32xf32>
    %126 = tpu.matmul %124, %125, %cst_58 {dimension_numbers = #tpu.dot_dimension_numbers<[1], [0], [0], [1], [0, 0, 1, 1], [], []>} : vector<64x64xf32>, vector<64x32xf32>, vector<64x32xf32> -> vector<64x32xf32>
    %c0_59 = arith.constant 0 : index
    %c0_60 = arith.constant 0 : index
    %127 = vector.load %arg15[%c0_59, %c0_60] : memref<1x32xf32, #tpu.memory_space<vmem>>, vector<1x32xf32>
    %128 = vector.broadcast %127 : vector<1x32xf32> to vector<64x32xf32>
    %129 = arith.addf %126, %128 : vector<64x32xf32>
    %130 = arith.addf %80, %129 : vector<64x32xf32>
    %c0_61 = arith.constant 0 : index
    %c0_62 = arith.constant 0 : index
    %131 = vector.load %arg16[%c0_61, %c0_62] : memref<1x32xf32, #tpu.memory_space<vmem>>, vector<1x32xf32>
    %c0_63 = arith.constant 0 : index
    %c0_64 = arith.constant 0 : index
    %132 = vector.load %arg17[%c0_63, %c0_64] : memref<1x32xf32, #tpu.memory_space<vmem>>, vector<1x32xf32>
    %133 = arith.mulf %130, %130 : vector<64x32xf32>
    %134 = tpu.concatenate %130, %133 in 1 : vector<64x32xf32>, vector<64x32xf32> -> vector<64x64xf32>
    %cst_65 = arith.constant dense<0.000000e+00> : vector<64xf32>
    %135 = vector.multi_reduction <add>, %134, %cst_65 [0] : vector<64x64xf32> to vector<64xf32>
    %136 = vector.shape_cast %135 : vector<64xf32> to vector<1x64xf32>
    %cst_66 = arith.constant 6.400000e+01 : f32
    %137 = vector.broadcast %cst_66 : f32 to vector<1x64xf32>
    %138 = arith.divf %136, %137 : vector<1x64xf32>
    %139 = vector.extract_strided_slice %138 {offsets = [0, 0], sizes = [1, 32], strides = [1, 1]} : vector<1x64xf32> to vector<1x32xf32>
    %140 = vector.extract_strided_slice %138 {offsets = [0, 32], sizes = [1, 32], strides = [1, 1]} : vector<1x64xf32> to vector<1x32xf32>
    %141 = arith.mulf %139, %139 : vector<1x32xf32>
    %142 = arith.subf %140, %141 : vector<1x32xf32>
    %143 = vector.broadcast %139 : vector<1x32xf32> to vector<64x32xf32>
    %144 = arith.subf %130, %143 : vector<64x32xf32>
    %cst_67 = arith.constant 9.99999974E-6 : f32
    %145 = vector.broadcast %cst_67 : f32 to vector<1x32xf32>
    %146 = arith.addf %142, %145 : vector<1x32xf32>
    %147 = math.rsqrt %146 : vector<1x32xf32>
    %148 = vector.broadcast %147 : vector<1x32xf32> to vector<64x32xf32>
    %149 = arith.mulf %144, %148 : vector<64x32xf32>
    %150 = vector.broadcast %131 : vector<1x32xf32> to vector<64x32xf32>
    %151 = arith.mulf %149, %150 : vector<64x32xf32>
    %152 = vector.broadcast %132 : vector<1x32xf32> to vector<64x32xf32>
    %153 = arith.addf %151, %152 : vector<64x32xf32>
    %c0_68 = arith.constant 0 : index
    %c0_69 = arith.constant 0 : index
    %154 = vector.load %arg18[%c0_68, %c0_69] : memref<64x32xf32, #tpu.memory_space<vmem>>, vector<64x32xf32>
    tpu.vector_store %arg18[%c0_68, %c0_69], %153 {strides = array<i32>} : memref<64x32xf32, #tpu.memory_space<vmem>>, vector<64x32xf32>,
    return
  }
  func.func @transform_0(%arg0: i32) -> (i32, i32) {
    %c0_i32 = arith.constant 0 : i32
    %c0_i32_0 = arith.constant 0 : i32
    %c0_i32_1 = arith.constant 0 : i32
    return %c0_i32, %c0_i32_0 : i32, i32
  }
  func.func @transform_1(%arg0: i32) -> (i32, i32) {
    %c0_i32 = arith.constant 0 : i32
    %c0_i32_0 = arith.constant 0 : i32
    %c0_i32_1 = arith.constant 0 : i32
    return %c0_i32, %c0_i32_0 : i32, i32
  }
  func.func @transform_2(%arg0: i32) -> (i32, i32) {
    %c0_i32 = arith.constant 0 : i32
    %c0_i32_0 = arith.constant 0 : i32
    %c0_i32_1 = arith.constant 0 : i32
    return %c0_i32, %c0_i32_0 : i32, i32
  }
  func.func @transform_3(%arg0: i32) -> (i32, i32) {
    %c0_i32 = arith.constant 0 : i32
    %c0_i32_0 = arith.constant 0 : i32
    %c0_i32_1 = arith.constant 0 : i32
    return %c0_i32, %c0_i32_0 : i32, i32
  }
  func.func @transform_4(%arg0: i32) -> (i32, i32, i32) {
    %c0_i32 = arith.constant 0 : i32
    %c0_i32_0 = arith.constant 0 : i32
    %c0_i32_1 = arith.constant 0 : i32
    %c0_i32_2 = arith.constant 0 : i32
    return %c0_i32, %c0_i32_0, %c0_i32_1 : i32, i32, i32
  }
  func.func @transform_5(%arg0: i32) -> (i32, i32, i32) {
    %c0_i32 = arith.constant 0 : i32
    %c0_i32_0 = arith.constant 0 : i32
    %c0_i32_1 = arith.constant 0 : i32
    %c0_i32_2 = arith.constant 0 : i32
    return %c0_i32, %c0_i32_0, %c0_i32_1 : i32, i32, i32
  }
  func.func @transform_6(%arg0: i32) -> (i32, i32) {
    %c0_i32 = arith.constant 0 : i32
    %c0_i32_0 = arith.constant 0 : i32
    %c0_i32_1 = arith.constant 0 : i32
    return %c0_i32, %c0_i32_0 : i32, i32
  }
  func.func @transform_7(%arg0: i32) -> (i32, i32) {
    %c0_i32 = arith.constant 0 : i32
    %c0_i32_0 = arith.constant 0 : i32
    %c0_i32_1 = arith.constant 0 : i32
    return %c0_i32, %c0_i32_0 : i32, i32
  }
  func.func @transform_8(%arg0: i32) -> (i32, i32) {
    %c0_i32 = arith.constant 0 : i32
    %c0_i32_0 = arith.constant 0 : i32
    %c0_i32_1 = arith.constant 0 : i32
    return %c0_i32, %c0_i32_0 : i32, i32
  }
  func.func @transform_9(%arg0: i32) -> (i32, i32) {
    %c0_i32 = arith.constant 0 : i32
    %c0_i32_0 = arith.constant 0 : i32
    %c0_i32_1 = arith.constant 0 : i32
    return %c0_i32, %c0_i32_0 : i32, i32
  }
  func.func @transform_10(%arg0: i32) -> (i32, i32) {
    %c0_i32 = arith.constant 0 : i32
    %c0_i32_0 = arith.constant 0 : i32
    %c0_i32_1 = arith.constant 0 : i32
    return %c0_i32, %c0_i32_0 : i32, i32
  }
  func.func @transform_11(%arg0: i32) -> (i32, i32) {
    %c0_i32 = arith.constant 0 : i32
    %c0_i32_0 = arith.constant 0 : i32
    %c0_i32_1 = arith.constant 0 : i32
    return %c0_i32, %c0_i32_0 : i32, i32
  }
  func.func @transform_12(%arg0: i32) -> (i32, i32) {
    %c0_i32 = arith.constant 0 : i32
    %c0_i32_0 = arith.constant 0 : i32
    %c0_i32_1 = arith.constant 0 : i32
    return %c0_i32, %c0_i32_0 : i32, i32
  }
  func.func @transform_13(%arg0: i32) -> (i32, i32) {
    %c0_i32 = arith.constant 0 : i32
    %c0_i32_0 = arith.constant 0 : i32
    %c0_i32_1 = arith.constant 0 : i32
    return %c0_i32, %c0_i32_0 : i32, i32
  }
  func.func @transform_14(%arg0: i32) -> (i32, i32) {
    %c0_i32 = arith.constant 0 : i32
    %c0_i32_0 = arith.constant 0 : i32
    %c0_i32_1 = arith.constant 0 : i32
    return %c0_i32, %c0_i32_0 : i32, i32
  }
  func.func @transform_15(%arg0: i32) -> (i32, i32) {
    %c0_i32 = arith.constant 0 : i32
    %c0_i32_0 = arith.constant 0 : i32
    %c0_i32_1 = arith.constant 0 : i32
    return %c0_i32, %c0_i32_0 : i32, i32
  }
  func.func @transform_16(%arg0: i32) -> (i32, i32) {
    %c0_i32 = arith.constant 0 : i32
    %c0_i32_0 = arith.constant 0 : i32
    %c0_i32_1 = arith.constant 0 : i32
    return %c0_i32, %c0_i32_0 : i32, i32
  }
  func.func @transform_17(%arg0: i32) -> (i32, i32) {
    %c0_i32 = arith.constant 0 : i32
    %c0_i32_0 = arith.constant 0 : i32
    %c0_i32_1 = arith.constant 0 : i32
    return %c0_i32, %c0_i32_0 : i32, i32
  }
}

</mosaic_0001>

<llo_original>
// kernel: tile.7
$region0: #{tile.7}
  %s0 = inlined_call_operand.vmem [shape: f32[4,8,4], index: 0, kind: input, shape index: {}]
  %s1 = inlined_call_operand.vmem [shape: f32[32,4], index: 1, kind: output, shape index: {}]
  $region1: #{tile.7} parent=0
    #allocation0 [shape = 'u8[4096]{0}', space=vmem, size = 0x1000, scoped, tag = 'scoped mem for output reshape']
    #allocation1 [shape = 'u8[16384]{0}', space=vmem, size = 0x4000, scoped, tag = 'scoped mem for input reshape']
    %s3 = sshllo.u32 0, 4
    %s4 = smul.addr 4, 3
    %s5 = scalar_lea.vmem %s0, %s4
    %v6 = vld [vmem:[%s5] sm:%s3]
    %s7 = scalar_lea.vmem [#allocation1], 24
    %8 = vst [vmem:[%s7] sm:%s3] %v6
    %s9 = smul.addr 4, 2
    %s10 = scalar_lea.vmem %s0, %s9
    %v11 = vld [vmem:[%s10] sm:%s3]
    %s12 = scalar_lea.vmem [#allocation1], 16
    %13 = vst [vmem:[%s12] sm:%s3] %v11
    %s14 = scalar_lea.vmem %s0, 4
    %v15 = vld [vmem:[%s14] sm:%s3]
    %s16 = scalar_lea.vmem [#allocation1], 8
    %17 = vst [vmem:[%s16] sm:%s3] %v15
    %v18 = vld [vmem:[%s0] sm:%s3]
    %19 = vst [vmem:[#allocation1] sm:%s3] %v18
    %v20 = vld [vmem:[#allocation1] ss:$8 sm:$0xf]
    %vm21 = vcmask 64512
    %22 = vst.msk [vmem:[#allocation0] sm:$0xf] %vm21, %v20
    %s23 = scalar_lea.vmem [#allocation1], 3
    %v24 = vld [vmem:[%s23] ss:$8 sm:$0xf]
    %25 = vrot.lane.b32.xlu0 %v24, 24
    %v26 = vpop.permute.xlu0 %25
    %vm27 = vcmask 261312
    %28 = vst.msk [vmem:[#allocation0] sm:$0xf] %vm27, %v26
    %s29 = scalar_lea.vmem [#allocation1], 2
    %v30 = vld [vmem:[%s29] ss:$8 sm:$0xf]
    %31 = vrot.lane.b32.xlu0 %v30, 16
    %v32 = vpop.permute.xlu0 %31
    %vm33 = vcmask 195712
    %34 = vst.msk [vmem:[#allocation0] sm:$0xf] %vm33, %v32
    %s35 = scalar_lea.vmem [#allocation1], 1
    %v36 = vld [vmem:[%s35] ss:$8 sm:$0xf]
    %37 = vrot.lane.b32.xlu0 %v36, 8
    %v38 = vpop.permute.xlu0 %37
    %vm39 = vcmask 130112
    %40 = vst.msk [vmem:[#allocation0] sm:$0xf] %vm39, %v38
    %s42 = sshllo.u32 0, 4
    %v44 = vld [vmem:[#allocation0] sm:%s42]
    %s45 = sshllo.u32 0, 4
    %46 = vst [vmem:[%s1] sm:%s45] %v44

// kernel: mapped_tst_cross_encoder_layer.1
$region0: #{mapped_tst_cross_encoder_layer.1}
  #allocation0 [shape = 'u32[]', space=smem, size = 0x4, offset = 0x4, fixed_abs, tag = 'smem constant byte address 0x4 - core index']
  #allocation1 [shape = 'u32[144,128]{1,0:T(1,128)}', space=vmem, size = 0x12000, scoped, tag = 'internal scratch']
  %s0 = inlined_call_operand.vmem [shape: f32[64,32], index: 0, kind: input, shape index: {}]
  %s1 = inlined_call_operand.vmem [shape: f32[64,32], index: 1, kind: input, shape index: {}]
  %s2 = inlined_call_operand.vmem [shape: f32[32,32], index: 2, kind: input, shape index: {}]
  %s3 = inlined_call_operand.vmem [shape: f32[1,32], index: 3, kind: input, shape index: {}]
  %s4 = inlined_call_operand.vmem [shape: f32[4,16,32], index: 4, kind: input, shape index: {}]
  %s5 = inlined_call_operand.vmem [shape: f32[4,16,32], index: 5, kind: input, shape index: {}]
  %s6 = inlined_call_operand.vmem [shape: f32[32,32], index: 6, kind: input, shape index: {}]
  %s7 = inlined_call_operand.vmem [shape: f32[1,32], index: 7, kind: input, shape index: {}]
  %s8 = inlined_call_operand.vmem [shape: f32[64,8], index: 8, kind: input, shape index: {}]
  %s9 = inlined_call_operand.vmem [shape: f32[1,32], index: 9, kind: input, shape index: {}]
  %s10 = inlined_call_operand.vmem [shape: f32[1,32], index: 10, kind: input, shape index: {}]
  %s11 = inlined_call_operand.vmem [shape: f32[32,64], index: 11, kind: input, shape index: {}]
  %s12 = inlined_call_operand.vmem [shape: f32[1,64], index: 12, kind: input, shape index: {}]
  %s13 = inlined_call_operand.vmem [shape: f32[64,32], index: 13, kind: input, shape index: {}]
  %s14 = inlined_call_operand.vmem [shape: f32[1,32], index: 14, kind: input, shape index: {}]
  %s15 = inlined_call_operand.vmem [shape: f32[1,32], index: 15, kind: input, shape index: {}]
  %s16 = inlined_call_operand.vmem [shape: f32[1,32], index: 16, kind: input, shape index: {}]
  %s17 = inlined_call_operand.hbm [shape: f32[64,32], index: 17, kind: output, shape index: {}]
  %s18 = sld [smem:[#allocation0]]
  $region78: #{mapped_tst_cross_encoder_layer.1} parent=0
    _
  %s20 = ssub.s32 1, %s18
  %s21 = scalar_select 0, %s20, %s18
  $region1: #{mapped_tst_cross_encoder_layer.1} parent=0
    #allocation2 [shape = 'u8[32768]{0}', space=vmem, size = 0x8000, scoped, tag = 'output window, operand 0, single buffered']
    #allocation3 [shape = 's32[1]{0}', space=sflag, size = 0x4, scoped, tag = 'scoped memory for mapped_tst_cross_encoder_layer.1']
    %22 = vsyncpa [#allocation3], 0
    // Predicated region
    $region2: #{mapped_tst_cross_encoder_layer.1} parent=1 // pred_check
      _
    $region3: #{mapped_tst_cross_encoder_layer.1} parent=1 // pred_check_branch
      %24 = sbr.rel (0) target = $region5
    $region4: #{mapped_tst_cross_encoder_layer.1} parent=1 // pred_region
      _
    $region5: #{mapped_tst_cross_encoder_layer.1} parent=1 // pred_fallthru
      _
    // Predicated region
    $region6: #{mapped_tst_cross_encoder_layer.1} parent=1 // pred_check
      _
    $region7: #{mapped_tst_cross_encoder_layer.1} parent=1 // pred_check_branch
      %26 = sbr.rel (0) target = $region9
    $region8: #{mapped_tst_cross_encoder_layer.1} parent=1 // pred_region
      _
    $region9: #{mapped_tst_cross_encoder_layer.1} parent=1 // pred_fallthru
      _
    // Predicated region
    $region10: #{mapped_tst_cross_encoder_layer.1} parent=1 // pred_check
      _
    $region11: #{mapped_tst_cross_encoder_layer.1} parent=1 // pred_check_branch
      %28 = sbr.rel (0) target = $region13
    $region12: #{mapped_tst_cross_encoder_layer.1} parent=1 // pred_region
      _
    $region13: #{mapped_tst_cross_encoder_layer.1} parent=1 // pred_fallthru
      _
    // Predicated region
    $region14: #{mapped_tst_cross_encoder_layer.1} parent=1 // pred_check
      _
    $region15: #{mapped_tst_cross_encoder_layer.1} parent=1 // pred_check_branch
      %30 = sbr.rel (0) target = $region17
    $region16: #{mapped_tst_cross_encoder_layer.1} parent=1 // pred_region
      _
    $region17: #{mapped_tst_cross_encoder_layer.1} parent=1 // pred_fallthru
      _
    // Predicated region
    $region18: #{mapped_tst_cross_encoder_layer.1} parent=1 // pred_check
      _
    $region19: #{mapped_tst_cross_encoder_layer.1} parent=1 // pred_check_branch
      %32 = sbr.rel (0) target = $region21
    $region20: #{mapped_tst_cross_encoder_layer.1} parent=1 // pred_region
      _
    $region21: #{mapped_tst_cross_encoder_layer.1} parent=1 // pred_fallthru
      _
    // Predicated region
    $region22: #{mapped_tst_cross_encoder_layer.1} parent=1 // pred_check
      _
    $region23: #{mapped_tst_cross_encoder_layer.1} parent=1 // pred_check_branch
      %34 = sbr.rel (0) target = $region25
    $region24: #{mapped_tst_cross_encoder_layer.1} parent=1 // pred_region
      _
    $region25: #{mapped_tst_cross_encoder_layer.1} parent=1 // pred_fallthru
      _
    // Predicated region
    $region26: #{mapped_tst_cross_encoder_layer.1} parent=1 // pred_check
      _
    $region27: #{mapped_tst_cross_encoder_layer.1} parent=1 // pred_check_branch
      %36 = sbr.rel (0) target = $region29
    $region28: #{mapped_tst_cross_encoder_layer.1} parent=1 // pred_region
      _
    $region29: #{mapped_tst_cross_encoder_layer.1} parent=1 // pred_fallthru
      _
    // Predicated region
    $region30: #{mapped_tst_cross_encoder_layer.1} parent=1 // pred_check
      _
    $region31: #{mapped_tst_cross_encoder_layer.1} parent=1 // pred_check_branch
      %38 = sbr.rel (0) target = $region33
    $region32: #{mapped_tst_cross_encoder_layer.1} parent=1 // pred_region
      _
    $region33: #{mapped_tst_cross_encoder_layer.1} parent=1 // pred_fallthru
      _
    // Predicated region
    $region34: #{mapped_tst_cross_encoder_layer.1} parent=1 // pred_check
      _
    $region35: #{mapped_tst_cross_encoder_layer.1} parent=1 // pred_check_branch
      %40 = sbr.rel (0) target = $region37
    $region36: #{mapped_tst_cross_encoder_layer.1} parent=1 // pred_region
      _
    $region37: #{mapped_tst_cross_encoder_layer.1} parent=1 // pred_fallthru
      _
    // Predicated region
    $region38: #{mapped_tst_cross_encoder_layer.1} parent=1 // pred_check
      _
    $region39: #{mapped_tst_cross_encoder_layer.1} parent=1 // pred_check_branch
      %42 = sbr.rel (0) target = $region41
    $region40: #{mapped_tst_cross_encoder_layer.1} parent=1 // pred_region
      _
    $region41: #{mapped_tst_cross_encoder_layer.1} parent=1 // pred_fallthru
      _
    // Predicated region
    $region42: #{mapped_tst_cross_encoder_layer.1} parent=1 // pred_check
      _
    $region43: #{mapped_tst_cross_encoder_layer.1} parent=1 // pred_check_branch
      %44 = sbr.rel (0) target = $region45
    $region44: #{mapped_tst_cross_encoder_layer.1} parent=1 // pred_region
      _
    $region45: #{mapped_tst_cross_encoder_layer.1} parent=1 // pred_fallthru
      _
    // Predicated region
    $region46: #{mapped_tst_cross_encoder_layer.1} parent=1 // pred_check
      _
    $region47: #{mapped_tst_cross_encoder_layer.1} parent=1 // pred_check_branch
      %46 = sbr.rel (0) target = $region49
    $region48: #{mapped_tst_cross_encoder_layer.1} parent=1 // pred_region
      _
    $region49: #{mapped_tst_cross_encoder_layer.1} parent=1 // pred_fallthru
      _
    // Predicated region
    $region50: #{mapped_tst_cross_encoder_layer.1} parent=1 // pred_check
      _
    $region51: #{mapped_tst_cross_encoder_layer.1} parent=1 // pred_check_branch
      %48 = sbr.rel (0) target = $region53
    $region52: #{mapped_tst_cross_encoder_layer.1} parent=1 // pred_region
      _
    $region53: #{mapped_tst_cross_encoder_layer.1} parent=1 // pred_fallthru
      _
    // Predicated region
    $region54: #{mapped_tst_cross_encoder_layer.1} parent=1 // pred_check
      _
    $region55: #{mapped_tst_cross_encoder_layer.1} parent=1 // pred_check_branch
      %50 = sbr.rel (0) target = $region57
    $region56: #{mapped_tst_cross_encoder_layer.1} parent=1 // pred_region
      _
    $region57: #{mapped_tst_cross_encoder_layer.1} parent=1 // pred_fallthru
      _
    // Predicated region
    $region58: #{mapped_tst_cross_encoder_layer.1} parent=1 // pred_check
      _
    $region59: #{mapped_tst_cross_encoder_layer.1} parent=1 // pred_check_branch
      %52 = sbr.rel (0) target = $region61
    $region60: #{mapped_tst_cross_encoder_layer.1} parent=1 // pred_region
      _
    $region61: #{mapped_tst_cross_encoder_layer.1} parent=1 // pred_fallthru
      _
    // Predicated region
    $region62: #{mapped_tst_cross_encoder_layer.1} parent=1 // pred_check
      _
    $region63: #{mapped_tst_cross_encoder_layer.1} parent=1 // pred_check_branch
      %54 = sbr.rel (0) target = $region65
    $region64: #{mapped_tst_cross_encoder_layer.1} parent=1 // pred_region
      _
    $region65: #{mapped_tst_cross_encoder_layer.1} parent=1 // pred_fallthru
      _
    // Predicated region
    $region66: #{mapped_tst_cross_encoder_layer.1} parent=1 // pred_check
      _
    $region67: #{mapped_tst_cross_encoder_layer.1} parent=1 // pred_check_branch
      %56 = sbr.rel (0) target = $region69
    $region68: #{mapped_tst_cross_encoder_layer.1} parent=1 // pred_region
      _
    $region69: #{mapped_tst_cross_encoder_layer.1} parent=1 // pred_fallthru
      _
    %v57 = vld [vmem:[%s1] sm:$0xff]
    %v58 = vld [vmem:[%s1 + $0x8] sm:$0xff]
    %v59 = vld [vmem:[%s1 + $0x10] sm:$0xff]
    %v60 = vld [vmem:[%s1 + $0x18] sm:$0xff]
    %v61 = vld [vmem:[%s1 + $0x20] sm:$0xff]
    %v62 = vld [vmem:[%s1 + $0x28] sm:$0xff]
    %v63 = vld [vmem:[%s1 + $0x30] sm:$0xff]
    %v64 = vld [vmem:[%s1 + $0x38] sm:$0xff]
    %v65 = vld [vmem:[%s2] sm:$0xff]
    %v66 = vld [vmem:[%s2 + $0x8] sm:$0xff]
    %v67 = vld [vmem:[%s2 + $0x10] sm:$0xff]
    %v68 = vld [vmem:[%s2 + $0x18] sm:$0xff]
    %v69 = vld [vmem:[%s3] sm:$0x1]
    %v71 = vlaneseq
    %v72 = vshrl.u32 %v71, 7
    %v73 = vsub.s32 0, %v72
    %v74 = vrot.slane %v69, %v73
    %vm76 = vcmask 261120
    %v78 = vsel %vm76, %v57, 0
    %v81 = vsel %vm76, %v58, 0
    %v84 = vsel %vm76, %v59, 0
    %v87 = vsel %vm76, %v60, 0
    %v90 = vsel %vm76, %v61, 0
    %v93 = vsel %vm76, %v62, 0
    %v96 = vsel %vm76, %v63, 0
    %v99 = vsel %vm76, %v64, 0
    %101 = vmatprep.subr.mxu0 0.0
    %102 = vmatpush1.msra.mxu0 %v65
    %103 = vmatprep.subr.mxu0 0.0
    %104 = vmatpush1.msra.mxu0 %v66
    %105 = vmatprep.subr.mxu0 0.0
    %106 = vmatpush1.msra.mxu0 %v67
    %107 = vmatprep.subr.mxu0 0.0
    %108 = vmatpush1.msra.mxu0 %v68
    %109 = vmatprep.subr.mxu0 0.0
    %110 = vmatpush1.msra.mxu0 0.0
    %111 = vmatprep.subr.mxu0 0.0
    %112 = vmatpush1.msra.mxu0 0.0
    %113 = vmatprep.subr.mxu0 0.0
    %114 = vmatpush1.msra.mxu0 0.0
    %115 = vmatprep.subr.mxu0 0.0
    %116 = vmatpush1.msra.mxu0 0.0
    %117 = vmatprep.subr.mxu0 0.0
    %118 = vmatpush1.msra.mxu0 0.0
    %119 = vmatprep.subr.mxu0 0.0
    %120 = vmatpush1.msra.mxu0 0.0
    %121 = vmatprep.subr.mxu0 0.0
    %122 = vmatpush1.msra.mxu0 0.0
    %123 = vmatprep.subr.mxu0 0.0
    %124 = vmatpush1.msra.mxu0 0.0
    %125 = vmatprep.subr.mxu0 0.0
    %126 = vmatpush1.msra.mxu0 0.0
    %127 = vmatprep.subr.mxu0 0.0
    %128 = vmatpush1.msra.mxu0 0.0
    %129 = vmatprep.subr.mxu0 0.0
    %130 = vmatpush1.msra.mxu0 0.0
    %131 = vmatprep.subr.mxu0 0.0
    %132 = vmatpush1.msra.mxu0 0.0
    %133 = vmatprep.subr.mxu0 0.0
    %134 = vmatpush1.msra.mxu0 0.0
    %135 = vmatprep.subr.mxu0 0.0
    %136 = vmatpush1.msra.mxu0 0.0
    %137 = vmatprep.subr.mxu0 0.0
    %138 = vmatpush1.msra.mxu0 0.0
    %139 = vmatprep.subr.mxu0 0.0
    %140 = vmatpush1.msra.mxu0 0.0
    %141 = vmatprep.subr.mxu0 0.0
    %142 = vmatpush1.msra.mxu0 0.0
    %143 = vmatprep.subr.mxu0 0.0
    %144 = vmatpush1.msra.mxu0 0.0
    %145 = vmatprep.subr.mxu0 0.0
    %146 = vmatpush1.msra.mxu0 0.0
    %147 = vmatprep.subr.mxu0 0.0
    %148 = vmatpush1.msra.mxu0 0.0
    %149 = vmatprep.subr.mxu0 0.0
    %150 = vmatpush1.msra.mxu0 0.0
    %151 = vmatprep.subr.mxu0 0.0
    %152 = vmatpush1.msra.mxu0 0.0
    %153 = vmatprep.subr.mxu0 0.0
    %154 = vmatpush1.msra.mxu0 0.0
    %155 = vmatprep.subr.mxu0 0.0
    %156 = vmatpush1.msra.mxu0 0.0
    %157 = vmatprep.subr.mxu0 0.0
    %158 = vmatpush1.msra.mxu0 0.0
    %159 = vmatprep.subr.mxu0 0.0
    %160 = vmatpush1.msra.mxu0 0.0
    %161 = vmatprep.subr.mxu0 0.0
    %162 = vmatpush1.msra.mxu0 0.0
    %163 = vmatprep.subr.mxu0 0.0
    %164 = vmatpush1.msra.mxu0 0.0
    %165 = vmatprep.mubr.f32.mxu0 0.0
    %166 = vmatmul.mubr.f32.gmra.mrb[0].mxu0 %v78
    %v167 = vpop.f32.mrb[0].mxu0
    %v168 = vadd.f32 %v74, %v167
    %v169 = vpop.f32.mrb[0].mxu0
    %170 = vmatprep.mubr.f32.mxu0 0.0
    %171 = vmatmul.mubr.f32.gmra.mrb[0].mxu0 %v81
    %v172 = vpop.f32.mrb[0].mxu0
    %v173 = vadd.f32 %v74, %v172
    %v174 = vpop.f32.mrb[0].mxu0
    %175 = vmatprep.mubr.f32.mxu0 0.0
    %176 = vmatmul.mubr.f32.gmra.mrb[0].mxu0 %v84
    %v177 = vpop.f32.mrb[0].mxu0
    %v178 = vadd.f32 %v74, %v177
    %v179 = vpop.f32.mrb[0].mxu0
    %180 = vmatprep.mubr.f32.mxu0 0.0
    %181 = vmatmul.mubr.f32.gmra.mrb[0].mxu0 %v87
    %v182 = vpop.f32.mrb[0].mxu0
    %v183 = vadd.f32 %v74, %v182
    %v184 = vpop.f32.mrb[0].mxu0
    %185 = vmatprep.mubr.f32.mxu0 0.0
    %186 = vmatmul.mubr.f32.gmra.mrb[0].mxu0 %v90
    %v187 = vpop.f32.mrb[0].mxu0
    %v188 = vadd.f32 %v74, %v187
    %v189 = vpop.f32.mrb[0].mxu0
    %190 = vmatprep.mubr.f32.mxu0 0.0
    %191 = vmatmul.mubr.f32.gmra.mrb[0].mxu0 %v93
    %v192 = vpop.f32.mrb[0].mxu0
    %v193 = vadd.f32 %v74, %v192
    %v194 = vpop.f32.mrb[0].mxu0
    %195 = vmatprep.mubr.f32.mxu0 0.0
    %196 = vmatmul.mubr.f32.gmra.mrb[0].mxu0 %v96
    %v197 = vpop.f32.mrb[0].mxu0
    %v198 = vadd.f32 %v74, %v197
    %v199 = vpop.f32.mrb[0].mxu0
    %200 = vmatprep.mubr.f32.mxu0 0.0
    %201 = vmatmul.mubr.f32.gmra.mrb[0].mxu0 %v99
    %v202 = vpop.f32.mrb[0].mxu0
    %v203 = vadd.f32 %v74, %v202
    %v204 = vpop.f32.mrb[0].mxu0
    %205 = vdwg.mxu0
    %v206 = vld [vmem:[%s4] sm:$0xff]
    %v207 = vld [vmem:[%s4 + $0x8] sm:$0xff]
    %v208 = vld [vmem:[%s4 + $0x10] sm:$0xff]
    %v209 = vld [vmem:[%s4 + $0x18] sm:$0xff]
    %v210 = vld [vmem:[%s4 + $0x20] sm:$0xff]
    %v211 = vld [vmem:[%s4 + $0x28] sm:$0xff]
    %v212 = vld [vmem:[%s4 + $0x30] sm:$0xff]
    %v213 = vld [vmem:[%s4 + $0x38] sm:$0xff]
    %v215 = vsel %vm76, %v206, 0
    %v218 = vsel %vm76, %v207, 0
    %v221 = vsel %vm76, %v168, 0
    %v224 = vsel %vm76, %v173, 0
    %226 = vmatprep.subr.mxu0 0.0
    %227 = vmatpush1.xpose.msra.mxu0 %v221
    %228 = vmatprep.subr.mxu0 0.0
    %229 = vmatpush1.xpose.msra.mxu0 %v224
    %230 = vmatprep.subr.mxu0 0.0
    %231 = vmatpush1.xpose.msra.mxu0 0.0
    %232 = vmatprep.subr.mxu0 0.0
    %233 = vmatpush1.xpose.msra.mxu0 0.0
    %234 = vmatprep.subr.mxu0 0.0
    %235 = vmatpush1.xpose.msra.mxu0 0.0
    %236 = vmatprep.subr.mxu0 0.0
    %237 = vmatpush1.xpose.msra.mxu0 0.0
    %238 = vmatprep.subr.mxu0 0.0
    %239 = vmatpush1.xpose.msra.mxu0 0.0
    %240 = vmatprep.subr.mxu0 0.0
    %241 = vmatpush1.xpose.msra.mxu0 0.0
    %242 = vmatprep.subr.mxu0 0.0
    %243 = vmatpush1.xpose.msra.mxu0 0.0
    %244 = vmatprep.subr.mxu0 0.0
    %245 = vmatpush1.xpose.msra.mxu0 0.0
    %246 = vmatprep.subr.mxu0 0.0
    %247 = vmatpush1.xpose.msra.mxu0 0.0
    %248 = vmatprep.subr.mxu0 0.0
    %249 = vmatpush1.xpose.msra.mxu0 0.0
    %250 = vmatprep.subr.mxu0 0.0
    %251 = vmatpush1.xpose.msra.mxu0 0.0
    %252 = vmatprep.subr.mxu0 0.0
    %253 = vmatpush1.xpose.msra.mxu0 0.0
    %254 = vmatprep.subr.mxu0 0.0
    %255 = vmatpush1.xpose.msra.mxu0 0.0
    %256 = vmatprep.subr.mxu0 0.0
    %257 = vmatpush1.xpose.msra.mxu0 0.0
    %258 = vmatprep.subr.mxu0 0.0
    %259 = vmatpush1.xpose.msra.mxu0 0.0
    %260 = vmatprep.subr.mxu0 0.0
    %261 = vmatpush1.xpose.msra.mxu0 0.0
    %262 = vmatprep.subr.mxu0 0.0
    %263 = vmatpush1.xpose.msra.mxu0 0.0
    %264 = vmatprep.subr.mxu0 0.0
    %265 = vmatpush1.xpose.msra.mxu0 0.0
    %266 = vmatprep.subr.mxu0 0.0
    %267 = vmatpush1.xpose.msra.mxu0 0.0
    %268 = vmatprep.subr.mxu0 0.0
    %269 = vmatpush1.xpose.msra.mxu0 0.0
    %270 = vmatprep.subr.mxu0 0.0
    %271 = vmatpush1.xpose.msra.mxu0 0.0
    %272 = vmatprep.subr.mxu0 0.0
    %273 = vmatpush1.xpose.msra.mxu0 0.0
    %274 = vmatprep.subr.mxu0 0.0
    %275 = vmatpush1.xpose.msra.mxu0 0.0
    %276 = vmatprep.subr.mxu0 0.0
    %277 = vmatpush1.xpose.msra.mxu0 0.0
    %278 = vmatprep.subr.mxu0 0.0
    %279 = vmatpush1.xpose.msra.mxu0 0.0
    %280 = vmatprep.subr.mxu0 0.0
    %281 = vmatpush1.xpose.msra.mxu0 0.0
    %282 = vmatprep.subr.mxu0 0.0
    %283 = vmatpush1.xpose.msra.mxu0 0.0
    %284 = vmatprep.subr.mxu0 0.0
    %285 = vmatpush1.xpose.msra.mxu0 0.0
    %286 = vmatprep.subr.mxu0 0.0
    %287 = vmatpush1.xpose.msra.mxu0 0.0
    %288 = vmatprep.subr.mxu0 0.0
    %289 = vmatpush1.xpose.msra.mxu0 0.0
    %290 = vmatprep.mubr.f32.mxu0 0.0
    %291 = vmatmul.mubr.f32.gmra.mrb[0].mxu0 %v215
    %v292 = vpop.f32.mrb[0].mxu0
    %v293 = vadd.f32 0.0, %v292
    %v294 = vpop.f32.mrb[0].mxu0
    %295 = vmatprep.mubr.f32.mxu0 0.0
    %296 = vmatmul.mubr.f32.gmra.mrb[0].mxu0 %v218
    %v297 = vpop.f32.mrb[0].mxu0
    %v298 = vadd.f32 0.0, %v297
    %v299 = vpop.f32.mrb[0].mxu0
    %300 = vdwg.mxu0
    %v302 = vsel %vm76, %v208, 0
    %v305 = vsel %vm76, %v209, 0
    %v308 = vsel %vm76, %v178, 0
    %v311 = vsel %vm76, %v183, 0
    %313 = vmatprep.subr.mxu0 0.0
    %314 = vmatpush1.xpose.msra.mxu0 %v308
    %315 = vmatprep.subr.mxu0 0.0
    %316 = vmatpush1.xpose.msra.mxu0 %v311
    %317 = vmatprep.subr.mxu0 0.0
    %318 = vmatpush1.xpose.msra.mxu0 0.0
    %319 = vmatprep.subr.mxu0 0.0
    %320 = vmatpush1.xpose.msra.mxu0 0.0
    %321 = vmatprep.subr.mxu0 0.0
    %322 = vmatpush1.xpose.msra.mxu0 0.0
    %323 = vmatprep.subr.mxu0 0.0
    %324 = vmatpush1.xpose.msra.mxu0 0.0
    %325 = vmatprep.subr.mxu0 0.0
    %326 = vmatpush1.xpose.msra.mxu0 0.0
    %327 = vmatprep.subr.mxu0 0.0
    %328 = vmatpush1.xpose.msra.mxu0 0.0
    %329 = vmatprep.subr.mxu0 0.0
    %330 = vmatpush1.xpose.msra.mxu0 0.0
    %331 = vmatprep.subr.mxu0 0.0
    %332 = vmatpush1.xpose.msra.mxu0 0.0
    %333 = vmatprep.subr.mxu0 0.0
    %334 = vmatpush1.xpose.msra.mxu0 0.0
    %335 = vmatprep.subr.mxu0 0.0
    %336 = vmatpush1.xpose.msra.mxu0 0.0
    %337 = vmatprep.subr.mxu0 0.0
    %338 = vmatpush1.xpose.msra.mxu0 0.0
    %339 = vmatprep.subr.mxu0 0.0
    %340 = vmatpush1.xpose.msra.mxu0 0.0
    %341 = vmatprep.subr.mxu0 0.0
    %342 = vmatpush1.xpose.msra.mxu0 0.0
    %343 = vmatprep.subr.mxu0 0.0
    %344 = vmatpush1.xpose.msra.mxu0 0.0
    %345 = vmatprep.subr.mxu0 0.0
    %346 = vmatpush1.xpose.msra.mxu0 0.0
    %347 = vmatprep.subr.mxu0 0.0
    %348 = vmatpush1.xpose.msra.mxu0 0.0
    %349 = vmatprep.subr.mxu0 0.0
    %350 = vmatpush1.xpose.msra.mxu0 0.0
    %351 = vmatprep.subr.mxu0 0.0
    %352 = vmatpush1.xpose.msra.mxu0 0.0
    %353 = vmatprep.subr.mxu0 0.0
    %354 = vmatpush1.xpose.msra.mxu0 0.0
    %355 = vmatprep.subr.mxu0 0.0
    %356 = vmatpush1.xpose.msra.mxu0 0.0
    %357 = vmatprep.subr.mxu0 0.0
    %358 = vmatpush1.xpose.msra.mxu0 0.0
    %359 = vmatprep.subr.mxu0 0.0
    %360 = vmatpush1.xpose.msra.mxu0 0.0
    %361 = vmatprep.subr.mxu0 0.0
    %362 = vmatpush1.xpose.msra.mxu0 0.0
    %363 = vmatprep.subr.mxu0 0.0
    %364 = vmatpush1.xpose.msra.mxu0 0.0
    %365 = vmatprep.subr.mxu0 0.0
    %366 = vmatpush1.xpose.msra.mxu0 0.0
    %367 = vmatprep.subr.mxu0 0.0
    %368 = vmatpush1.xpose.msra.mxu0 0.0
    %369 = vmatprep.subr.mxu0 0.0
    %370 = vmatpush1.xpose.msra.mxu0 0.0
    %371 = vmatprep.subr.mxu0 0.0
    %372 = vmatpush1.xpose.msra.mxu0 0.0
    %373 = vmatprep.subr.mxu0 0.0
    %374 = vmatpush1.xpose.msra.mxu0 0.0
    %375 = vmatprep.subr.mxu0 0.0
    %376 = vmatpush1.xpose.msra.mxu0 0.0
    %377 = vmatprep.mubr.f32.mxu0 0.0
    %378 = vmatmul.mubr.f32.gmra.mrb[0].mxu0 %v302
    %v379 = vpop.f32.mrb[0].mxu0
    %v380 = vadd.f32 0.0, %v379
    %v381 = vpop.f32.mrb[0].mxu0
    %382 = vmatprep.mubr.f32.mxu0 0.0
    %383 = vmatmul.mubr.f32.gmra.mrb[0].mxu0 %v305
    %v384 = vpop.f32.mrb[0].mxu0
    %v385 = vadd.f32 0.0, %v384
    %v386 = vpop.f32.mrb[0].mxu0
    %387 = vdwg.mxu0
    %v389 = vsel %vm76, %v210, 0
    %v392 = vsel %vm76, %v211, 0
    %v395 = vsel %vm76, %v188, 0
    %v398 = vsel %vm76, %v193, 0
    %400 = vmatprep.subr.mxu0 0.0
    %401 = vmatpush1.xpose.msra.mxu0 %v395
    %402 = vmatprep.subr.mxu0 0.0
    %403 = vmatpush1.xpose.msra.mxu0 %v398
    %404 = vmatprep.subr.mxu0 0.0
    %405 = vmatpush1.xpose.msra.mxu0 0.0
    %406 = vmatprep.subr.mxu0 0.0
    %407 = vmatpush1.xpose.msra.mxu0 0.0
    %408 = vmatprep.subr.mxu0 0.0
    %409 = vmatpush1.xpose.msra.mxu0 0.0
    %410 = vmatprep.subr.mxu0 0.0
    %411 = vmatpush1.xpose.msra.mxu0 0.0
    %412 = vmatprep.subr.mxu0 0.0
    %413 = vmatpush1.xpose.msra.mxu0 0.0
    %414 = vmatprep.subr.mxu0 0.0
    %415 = vmatpush1.xpose.msra.mxu0 0.0
    %416 = vmatprep.subr.mxu0 0.0
    %417 = vmatpush1.xpose.msra.mxu0 0.0
    %418 = vmatprep.subr.mxu0 0.0
    %419 = vmatpush1.xpose.msra.mxu0 0.0
    %420 = vmatprep.subr.mxu0 0.0
    %421 = vmatpush1.xpose.msra.mxu0 0.0
    %422 = vmatprep.subr.mxu0 0.0
    %423 = vmatpush1.xpose.msra.mxu0 0.0
    %424 = vmatprep.subr.mxu0 0.0
    %425 = vmatpush1.xpose.msra.mxu0 0.0
    %426 = vmatprep.subr.mxu0 0.0
    %427 = vmatpush1.xpose.msra.mxu0 0.0
    %428 = vmatprep.subr.mxu0 0.0
    %429 = vmatpush1.xpose.msra.mxu0 0.0
    %430 = vmatprep.subr.mxu0 0.0
    %431 = vmatpush1.xpose.msra.mxu0 0.0
    %432 = vmatprep.subr.mxu0 0.0
    %433 = vmatpush1.xpose.msra.mxu0 0.0
    %434 = vmatprep.subr.mxu0 0.0
    %435 = vmatpush1.xpose.msra.mxu0 0.0
    %436 = vmatprep.subr.mxu0 0.0
    %437 = vmatpush1.xpose.msra.mxu0 0.0
    %438 = vmatprep.subr.mxu0 0.0
    %439 = vmatpush1.xpose.msra.mxu0 0.0
    %440 = vmatprep.subr.mxu0 0.0
    %441 = vmatpush1.xpose.msra.mxu0 0.0
    %442 = vmatprep.subr.mxu0 0.0
    %443 = vmatpush1.xpose.msra.mxu0 0.0
    %444 = vmatprep.subr.mxu0 0.0
    %445 = vmatpush1.xpose.msra.mxu0 0.0
    %446 = vmatprep.subr.mxu0 0.0
    %447 = vmatpush1.xpose.msra.mxu0 0.0
    %448 = vmatprep.subr.mxu0 0.0
    %449 = vmatpush1.xpose.msra.mxu0 0.0
    %450 = vmatprep.subr.mxu0 0.0
    %451 = vmatpush1.xpose.msra.mxu0 0.0
    %452 = vmatprep.subr.mxu0 0.0
    %453 = vmatpush1.xpose.msra.mxu0 0.0
    %454 = vmatprep.subr.mxu0 0.0
    %455 = vmatpush1.xpose.msra.mxu0 0.0
    %456 = vmatprep.subr.mxu0 0.0
    %457 = vmatpush1.xpose.msra.mxu0 0.0
    %458 = vmatprep.subr.mxu0 0.0
    %459 = vmatpush1.xpose.msra.mxu0 0.0
    %460 = vmatprep.subr.mxu0 0.0
    %461 = vmatpush1.xpose.msra.mxu0 0.0
    %462 = vmatprep.subr.mxu0 0.0
    %463 = vmatpush1.xpose.msra.mxu0 0.0
    %464 = vmatprep.mubr.f32.mxu0 0.0
    %465 = vmatmul.mubr.f32.gmra.mrb[0].mxu0 %v389
    %v466 = vpop.f32.mrb[0].mxu0
    %v467 = vadd.f32 0.0, %v466
    %v468 = vpop.f32.mrb[0].mxu0
    %469 = vmatprep.mubr.f32.mxu0 0.0
    %470 = vmatmul.mubr.f32.gmra.mrb[0].mxu0 %v392
    %v471 = vpop.f32.mrb[0].mxu0
    %v472 = vadd.f32 0.0, %v471
    %v473 = vpop.f32.mrb[0].mxu0
    %474 = vdwg.mxu0
    %v476 = vsel %vm76, %v212, 0
    %v479 = vsel %vm76, %v213, 0
    %v482 = vsel %vm76, %v198, 0
    %v485 = vsel %vm76, %v203, 0
    %487 = vmatprep.subr.mxu0 0.0
    %488 = vmatpush1.xpose.msra.mxu0 %v482
    %489 = vmatprep.subr.mxu0 0.0
    %490 = vmatpush1.xpose.msra.mxu0 %v485
    %491 = vmatprep.subr.mxu0 0.0
    %492 = vmatpush1.xpose.msra.mxu0 0.0
    %493 = vmatprep.subr.mxu0 0.0
    %494 = vmatpush1.xpose.msra.mxu0 0.0
    %495 = vmatprep.subr.mxu0 0.0
    %496 = vmatpush1.xpose.msra.mxu0 0.0
    %497 = vmatprep.subr.mxu0 0.0
    %498 = vmatpush1.xpose.msra.mxu0 0.0
    %499 = vmatprep.subr.mxu0 0.0
    %500 = vmatpush1.xpose.msra.mxu0 0.0
    %501 = vmatprep.subr.mxu0 0.0
    %502 = vmatpush1.xpose.msra.mxu0 0.0
    %503 = vmatprep.subr.mxu0 0.0
    %504 = vmatpush1.xpose.msra.mxu0 0.0
    %505 = vmatprep.subr.mxu0 0.0
    %506 = vmatpush1.xpose.msra.mxu0 0.0
    %507 = vmatprep.subr.mxu0 0.0
    %508 = vmatpush1.xpose.msra.mxu0 0.0
    %509 = vmatprep.subr.mxu0 0.0
    %510 = vmatpush1.xpose.msra.mxu0 0.0
    %511 = vmatprep.subr.mxu0 0.0
    %512 = vmatpush1.xpose.msra.mxu0 0.0
    %513 = vmatprep.subr.mxu0 0.0
    %514 = vmatpush1.xpose.msra.mxu0 0.0
    %515 = vmatprep.subr.mxu0 0.0
    %516 = vmatpush1.xpose.msra.mxu0 0.0
    %517 = vmatprep.subr.mxu0 0.0
    %518 = vmatpush1.xpose.msra.mxu0 0.0
    %519 = vmatprep.subr.mxu0 0.0
    %520 = vmatpush1.xpose.msra.mxu0 0.0
    %521 = vmatprep.subr.mxu0 0.0
    %522 = vmatpush1.xpose.msra.mxu0 0.0
    %523 = vmatprep.subr.mxu0 0.0
    %524 = vmatpush1.xpose.msra.mxu0 0.0
    %525 = vmatprep.subr.mxu0 0.0
    %526 = vmatpush1.xpose.msra.mxu0 0.0
    %527 = vmatprep.subr.mxu0 0.0
    %528 = vmatpush1.xpose.msra.mxu0 0.0
    %529 = vmatprep.subr.mxu0 0.0
    %530 = vmatpush1.xpose.msra.mxu0 0.0
    %531 = vmatprep.subr.mxu0 0.0
    %532 = vmatpush1.xpose.msra.mxu0 0.0
    %533 = vmatprep.subr.mxu0 0.0
    %534 = vmatpush1.xpose.msra.mxu0 0.0
    %535 = vmatprep.subr.mxu0 0.0
    %536 = vmatpush1.xpose.msra.mxu0 0.0
    %537 = vmatprep.subr.mxu0 0.0
    %538 = vmatpush1.xpose.msra.mxu0 0.0
    %539 = vmatprep.subr.mxu0 0.0
    %540 = vmatpush1.xpose.msra.mxu0 0.0
    %541 = vmatprep.subr.mxu0 0.0
    %542 = vmatpush1.xpose.msra.mxu0 0.0
    %543 = vmatprep.subr.mxu0 0.0
    %544 = vmatpush1.xpose.msra.mxu0 0.0
    %545 = vmatprep.subr.mxu0 0.0
    %546 = vmatpush1.xpose.msra.mxu0 0.0
    %547 = vmatprep.subr.mxu0 0.0
    %548 = vmatpush1.xpose.msra.mxu0 0.0
    %549 = vmatprep.subr.mxu0 0.0
    %550 = vmatpush1.xpose.msra.mxu0 0.0
    %551 = vmatprep.mubr.f32.mxu0 0.0
    %552 = vmatmul.mubr.f32.gmra.mrb[0].mxu0 %v476
    %v553 = vpop.f32.mrb[0].mxu0
    %v554 = vadd.f32 0.0, %v553
    %v555 = vpop.f32.mrb[0].mxu0
    %556 = vmatprep.mubr.f32.mxu0 0.0
    %557 = vmatmul.mubr.f32.gmra.mrb[0].mxu0 %v479
    %v558 = vpop.f32.mrb[0].mxu0
    %v559 = vadd.f32 0.0, %v558
    %v560 = vpop.f32.mrb[0].mxu0
    %561 = vdwg.mxu0
    %vm562 = vcmask 130048
    %v563 = vsel %vm562, %v293, -inf
    %564 = vmax.xlane.f32.xlu0 %v563
    %v565 = vpop.xlane.xlu0 %564
    %v566 = vsel %vm562, %v298, -inf
    %567 = vmax.xlane.f32.xlu0 %v566
    %v568 = vpop.xlane.xlu0 %567
    %v569 = vsel %vm562, %v380, -inf
    %570 = vmax.xlane.f32.xlu0 %v569
    %v571 = vpop.xlane.xlu0 %570
    %v572 = vsel %vm562, %v385, -inf
    %573 = vmax.xlane.f32.xlu0 %v572
    %v574 = vpop.xlane.xlu0 %573
    %v575 = vsel %vm562, %v467, -inf
    %576 = vmax.xlane.f32.xlu0 %v575
    %v577 = vpop.xlane.xlu0 %576
    %v578 = vsel %vm562, %v472, -inf
    %579 = vmax.xlane.f32.xlu0 %v578
    %v580 = vpop.xlane.xlu0 %579
    %v581 = vsel %vm562, %v554, -inf
    %582 = vmax.xlane.f32.xlu0 %v581
    %v583 = vpop.xlane.xlu0 %582
    %v584 = vsel %vm562, %v559, -inf
    %585 = vmax.xlane.f32.xlu0 %v584
    %v586 = vpop.xlane.xlu0 %585
    %v587 = vsub.f32 %v293, %v565
    %v588 = vsub.f32 %v298, %v568
    %v589 = vsub.f32 %v380, %v571
    %v590 = vsub.f32 %v385, %v574
    %v591 = vsub.f32 %v467, %v577
    %v592 = vsub.f32 %v472, %v580
    %v593 = vsub.f32 %v554, %v583
    %v594 = vsub.f32 %v559, %v586
    %v595 = vmul.f32 %v587, 1.442695
    %v596 = vpow.pop %v595
    %v597 = vmul.f32 %v588, 1.442695
    %v598 = vpow.pop %v597
    %v599 = vmul.f32 %v589, 1.442695
    %v600 = vpow.pop %v599
    %v601 = vmul.f32 %v590, 1.442695
    %v602 = vpow.pop %v601
    %v603 = vmul.f32 %v591, 1.442695
    %v604 = vpow.pop %v603
    %v605 = vmul.f32 %v592, 1.442695
    %v606 = vpow.pop %v605
    %v607 = vmul.f32 %v593, 1.442695
    %v608 = vpow.pop %v607
    %v609 = vmul.f32 %v594, 1.442695
    %v610 = vpow.pop %v609
    %v611 = vsel %vm562, %v596, 0.0
    %612 = vadd.xlane.f32.xlu0 %v611
    %v613 = vpop.xlane.xlu0 %612
    %v614 = vsel %vm562, %v598, 0.0
    %615 = vadd.xlane.f32.xlu0 %v614
    %v616 = vpop.xlane.xlu0 %615
    %v617 = vsel %vm562, %v600, 0.0
    %618 = vadd.xlane.f32.xlu0 %v617
    %v619 = vpop.xlane.xlu0 %618
    %v620 = vsel %vm562, %v602, 0.0
    %621 = vadd.xlane.f32.xlu0 %v620
    %v622 = vpop.xlane.xlu0 %621
    %v623 = vsel %vm562, %v604, 0.0
    %624 = vadd.xlane.f32.xlu0 %v623
    %v625 = vpop.xlane.xlu0 %624
    %v626 = vsel %vm562, %v606, 0.0
    %627 = vadd.xlane.f32.xlu0 %v626
    %v628 = vpop.xlane.xlu0 %627
    %v629 = vsel %vm562, %v608, 0.0
    %630 = vadd.xlane.f32.xlu0 %v629
    %v631 = vpop.xlane.xlu0 %630
    %v632 = vsel %vm562, %v610, 0.0
    %633 = vadd.xlane.f32.xlu0 %v632
    %v634 = vpop.xlane.xlu0 %633
    %v635 = vrcp.pop %v613
    %v636 = vrcp.pop %v616
    %v637 = vrcp.pop %v619
    %v638 = vrcp.pop %v622
    %v639 = vrcp.pop %v625
    %v640 = vrcp.pop %v628
    %v641 = vrcp.pop %v631
    %v642 = vrcp.pop %v634
    %v643 = vmul.f32 %v596, %v635
    %v644 = vmul.f32 %v598, %v636
    %v645 = vmul.f32 %v600, %v637
    %v646 = vmul.f32 %v602, %v638
    %v647 = vmul.f32 %v604, %v639
    %v648 = vmul.f32 %v606, %v640
    %v649 = vmul.f32 %v608, %v641
    %v650 = vmul.f32 %v610, %v642
    %v652 = vsel %vm562, %v643, 0
    %v655 = vsel %vm562, %v644, 0
    %657 = vmatprep.subr.mxu0 0.0
    %658 = vmatpush1.msra.mxu0 %v168
    %659 = vmatprep.subr.mxu0 0.0
    %660 = vmatpush1.msra.mxu0 %v173
    %661 = vmatprep.subr.mxu0 0.0
    %662 = vmatpush1.msra.mxu0 0.0
    %663 = vmatprep.subr.mxu0 0.0
    %664 = vmatpush1.msra.mxu0 0.0
    %665 = vmatprep.subr.mxu0 0.0
    %666 = vmatpush1.msra.mxu0 0.0
    %667 = vmatprep.subr.mxu0 0.0
    %668 = vmatpush1.msra.mxu0 0.0
    %669 = vmatprep.subr.mxu0 0.0
    %670 = vmatpush1.msra.mxu0 0.0
    %671 = vmatprep.subr.mxu0 0.0
    %672 = vmatpush1.msra.mxu0 0.0
    %673 = vmatprep.subr.mxu0 0.0
    %674 = vmatpush1.msra.mxu0 0.0
    %675 = vmatprep.subr.mxu0 0.0
    %676 = vmatpush1.msra.mxu0 0.0
    %677 = vmatprep.subr.mxu0 0.0
    %678 = vmatpush1.msra.mxu0 0.0
    %679 = vmatprep.subr.mxu0 0.0
    %680 = vmatpush1.msra.mxu0 0.0
    %681 = vmatprep.subr.mxu0 0.0
    %682 = vmatpush1.msra.mxu0 0.0
    %683 = vmatprep.subr.mxu0 0.0
    %684 = vmatpush1.msra.mxu0 0.0
    %685 = vmatprep.subr.mxu0 0.0
    %686 = vmatpush1.msra.mxu0 0.0
    %687 = vmatprep.subr.mxu0 0.0
    %688 = vmatpush1.msra.mxu0 0.0
    %689 = vmatprep.subr.mxu0 0.0
    %690 = vmatpush1.msra.mxu0 0.0
    %691 = vmatprep.subr.mxu0 0.0
    %692 = vmatpush1.msra.mxu0 0.0
    %693 = vmatprep.subr.mxu0 0.0
    %694 = vmatpush1.msra.mxu0 0.0
    %695 = vmatprep.subr.mxu0 0.0
    %696 = vmatpush1.msra.mxu0 0.0
    %697 = vmatprep.subr.mxu0 0.0
    %698 = vmatpush1.msra.mxu0 0.0
    %699 = vmatprep.subr.mxu0 0.0
    %700 = vmatpush1.msra.mxu0 0.0
    %701 = vmatprep.subr.mxu0 0.0
    %702 = vmatpush1.msra.mxu0 0.0
    %703 = vmatprep.subr.mxu0 0.0
    %704 = vmatpush1.msra.mxu0 0.0
    %705 = vmatprep.subr.mxu0 0.0
    %706 = vmatpush1.msra.mxu0 0.0
    %707 = vmatprep.subr.mxu0 0.0
    %708 = vmatpush1.msra.mxu0 0.0
    %709 = vmatprep.subr.mxu0 0.0
    %710 = vmatpush1.msra.mxu0 0.0
    %711 = vmatprep.subr.mxu0 0.0
    %712 = vmatpush1.msra.mxu0 0.0
    %713 = vmatprep.subr.mxu0 0.0
    %714 = vmatpush1.msra.mxu0 0.0
    %715 = vmatprep.subr.mxu0 0.0
    %716 = vmatpush1.msra.mxu0 0.0
    %717 = vmatprep.subr.mxu0 0.0
    %718 = vmatpush1.msra.mxu0 0.0
    %719 = vmatprep.subr.mxu0 0.0
    %720 = vmatpush1.msra.mxu0 0.0
    %721 = vmatprep.mubr.f32.mxu0 0.0
    %722 = vmatmul.mubr.f32.gmra.mrb[0].mxu0 %v652
    %v723 = vpop.f32.mrb[0].mxu0
    %v724 = vadd.f32 0.0, %v723
    %v725 = vpop.f32.mrb[0].mxu0
    %726 = vmatprep.mubr.f32.mxu0 0.0
    %727 = vmatmul.mubr.f32.gmra.mrb[0].mxu0 %v655
    %v728 = vpop.f32.mrb[0].mxu0
    %v729 = vadd.f32 0.0, %v728
    %v730 = vpop.f32.mrb[0].mxu0
    %731 = vdwg.mxu0
    %v733 = vsel %vm562, %v645, 0
    %v736 = vsel %vm562, %v646, 0
    %738 = vmatprep.subr.mxu0 0.0
    %739 = vmatpush1.msra.mxu0 %v178
    %740 = vmatprep.subr.mxu0 0.0
    %741 = vmatpush1.msra.mxu0 %v183
    %742 = vmatprep.subr.mxu0 0.0
    %743 = vmatpush1.msra.mxu0 0.0
    %744 = vmatprep.subr.mxu0 0.0
    %745 = vmatpush1.msra.mxu0 0.0
    %746 = vmatprep.subr.mxu0 0.0
    %747 = vmatpush1.msra.mxu0 0.0
    %748 = vmatprep.subr.mxu0 0.0
    %749 = vmatpush1.msra.mxu0 0.0
    %750 = vmatprep.subr.mxu0 0.0
    %751 = vmatpush1.msra.mxu0 0.0
    %752 = vmatprep.subr.mxu0 0.0
    %753 = vmatpush1.msra.mxu0 0.0
    %754 = vmatprep.subr.mxu0 0.0
    %755 = vmatpush1.msra.mxu0 0.0
    %756 = vmatprep.subr.mxu0 0.0
    %757 = vmatpush1.msra.mxu0 0.0
    %758 = vmatprep.subr.mxu0 0.0
    %759 = vmatpush1.msra.mxu0 0.0
    %760 = vmatprep.subr.mxu0 0.0
    %761 = vmatpush1.msra.mxu0 0.0
    %762 = vmatprep.subr.mxu0 0.0
    %763 = vmatpush1.msra.mxu0 0.0
    %764 = vmatprep.subr.mxu0 0.0
    %765 = vmatpush1.msra.mxu0 0.0
    %766 = vmatprep.subr.mxu0 0.0
    %767 = vmatpush1.msra.mxu0 0.0
    %768 = vmatprep.subr.mxu0 0.0
    %769 = vmatpush1.msra.mxu0 0.0
    %770 = vmatprep.subr.mxu0 0.0
    %771 = vmatpush1.msra.mxu0 0.0
    %772 = vmatprep.subr.mxu0 0.0
    %773 = vmatpush1.msra.mxu0 0.0
    %774 = vmatprep.subr.mxu0 0.0
    %775 = vmatpush1.msra.mxu0 0.0
    %776 = vmatprep.subr.mxu0 0.0
    %777 = vmatpush1.msra.mxu0 0.0
    %778 = vmatprep.subr.mxu0 0.0
    %779 = vmatpush1.msra.mxu0 0.0
    %780 = vmatprep.subr.mxu0 0.0
    %781 = vmatpush1.msra.mxu0 0.0
    %782 = vmatprep.subr.mxu0 0.0
    %783 = vmatpush1.msra.mxu0 0.0
    %784 = vmatprep.subr.mxu0 0.0
    %785 = vmatpush1.msra.mxu0 0.0
    %786 = vmatprep.subr.mxu0 0.0
    %787 = vmatpush1.msra.mxu0 0.0
    %788 = vmatprep.subr.mxu0 0.0
    %789 = vmatpush1.msra.mxu0 0.0
    %790 = vmatprep.subr.mxu0 0.0
    %791 = vmatpush1.msra.mxu0 0.0
    %792 = vmatprep.subr.mxu0 0.0
    %793 = vmatpush1.msra.mxu0 0.0
    %794 = vmatprep.subr.mxu0 0.0
    %795 = vmatpush1.msra.mxu0 0.0
    %796 = vmatprep.subr.mxu0 0.0
    %797 = vmatpush1.msra.mxu0 0.0
    %798 = vmatprep.subr.mxu0 0.0
    %799 = vmatpush1.msra.mxu0 0.0
    %800 = vmatprep.subr.mxu0 0.0
    %801 = vmatpush1.msra.mxu0 0.0
    %802 = vmatprep.mubr.f32.mxu0 0.0
    %803 = vmatmul.mubr.f32.gmra.mrb[0].mxu0 %v733
    %v804 = vpop.f32.mrb[0].mxu0
    %v805 = vadd.f32 0.0, %v804
    %v806 = vpop.f32.mrb[0].mxu0
    %807 = vmatprep.mubr.f32.mxu0 0.0
    %808 = vmatmul.mubr.f32.gmra.mrb[0].mxu0 %v736
    %v809 = vpop.f32.mrb[0].mxu0
    %v810 = vadd.f32 0.0, %v809
    %v811 = vpop.f32.mrb[0].mxu0
    %812 = vdwg.mxu0
    %v814 = vsel %vm562, %v647, 0
    %v817 = vsel %vm562, %v648, 0
    %819 = vmatprep.subr.mxu0 0.0
    %820 = vmatpush1.msra.mxu0 %v188
    %821 = vmatprep.subr.mxu0 0.0
    %822 = vmatpush1.msra.mxu0 %v193
    %823 = vmatprep.subr.mxu0 0.0
    %824 = vmatpush1.msra.mxu0 0.0
    %825 = vmatprep.subr.mxu0 0.0
    %826 = vmatpush1.msra.mxu0 0.0
    %827 = vmatprep.subr.mxu0 0.0
    %828 = vmatpush1.msra.mxu0 0.0
    %829 = vmatprep.subr.mxu0 0.0
    %830 = vmatpush1.msra.mxu0 0.0
    %831 = vmatprep.subr.mxu0 0.0
    %832 = vmatpush1.msra.mxu0 0.0
    %833 = vmatprep.subr.mxu0 0.0
    %834 = vmatpush1.msra.mxu0 0.0
    %835 = vmatprep.subr.mxu0 0.0
    %836 = vmatpush1.msra.mxu0 0.0
    %837 = vmatprep.subr.mxu0 0.0
    %838 = vmatpush1.msra.mxu0 0.0
    %839 = vmatprep.subr.mxu0 0.0
    %840 = vmatpush1.msra.mxu0 0.0
    %841 = vmatprep.subr.mxu0 0.0
    %842 = vmatpush1.msra.mxu0 0.0
    %843 = vmatprep.subr.mxu0 0.0
    %844 = vmatpush1.msra.mxu0 0.0
    %845 = vmatprep.subr.mxu0 0.0
    %846 = vmatpush1.msra.mxu0 0.0
    %847 = vmatprep.subr.mxu0 0.0
    %848 = vmatpush1.msra.mxu0 0.0
    %849 = vmatprep.subr.mxu0 0.0
    %850 = vmatpush1.msra.mxu0 0.0
    %851 = vmatprep.subr.mxu0 0.0
    %852 = vmatpush1.msra.mxu0 0.0
    %853 = vmatprep.subr.mxu0 0.0
    %854 = vmatpush1.msra.mxu0 0.0
    %855 = vmatprep.subr.mxu0 0.0
    %856 = vmatpush1.msra.mxu0 0.0
    %857 = vmatprep.subr.mxu0 0.0
    %858 = vmatpush1.msra.mxu0 0.0
    %859 = vmatprep.subr.mxu0 0.0
    %860 = vmatpush1.msra.mxu0 0.0
    %861 = vmatprep.subr.mxu0 0.0
    %862 = vmatpush1.msra.mxu0 0.0
    %863 = vmatprep.subr.mxu0 0.0
    %864 = vmatpush1.msra.mxu0 0.0
    %865 = vmatprep.subr.mxu0 0.0
    %866 = vmatpush1.msra.mxu0 0.0
    %867 = vmatprep.subr.mxu0 0.0
    %868 = vmatpush1.msra.mxu0 0.0
    %869 = vmatprep.subr.mxu0 0.0
    %870 = vmatpush1.msra.mxu0 0.0
    %871 = vmatprep.subr.mxu0 0.0
    %872 = vmatpush1.msra.mxu0 0.0
    %873 = vmatprep.subr.mxu0 0.0
    %874 = vmatpush1.msra.mxu0 0.0
    %875 = vmatprep.subr.mxu0 0.0
    %876 = vmatpush1.msra.mxu0 0.0
    %877 = vmatprep.subr.mxu0 0.0
    %878 = vmatpush1.msra.mxu0 0.0
    %879 = vmatprep.subr.mxu0 0.0
    %880 = vmatpush1.msra.mxu0 0.0
    %881 = vmatprep.subr.mxu0 0.0
    %882 = vmatpush1.msra.mxu0 0.0
    %883 = vmatprep.mubr.f32.mxu0 0.0
    %884 = vmatmul.mubr.f32.gmra.mrb[0].mxu0 %v814
    %v885 = vpop.f32.mrb[0].mxu0
    %v886 = vadd.f32 0.0, %v885
    %v887 = vpop.f32.mrb[0].mxu0
    %888 = vmatprep.mubr.f32.mxu0 0.0
    %889 = vmatmul.mubr.f32.gmra.mrb[0].mxu0 %v817
    %v890 = vpop.f32.mrb[0].mxu0
    %v891 = vadd.f32 0.0, %v890
    %v892 = vpop.f32.mrb[0].mxu0
    %893 = vdwg.mxu0
    %v895 = vsel %vm562, %v649, 0
    %v898 = vsel %vm562, %v650, 0
    %900 = vmatprep.subr.mxu0 0.0
    %901 = vmatpush1.msra.mxu0 %v198
    %902 = vmatprep.subr.mxu0 0.0
    %903 = vmatpush1.msra.mxu0 %v203
    %904 = vmatprep.subr.mxu0 0.0
    %905 = vmatpush1.msra.mxu0 0.0
    %906 = vmatprep.subr.mxu0 0.0
    %907 = vmatpush1.msra.mxu0 0.0
    %908 = vmatprep.subr.mxu0 0.0
    %909 = vmatpush1.msra.mxu0 0.0
    %910 = vmatprep.subr.mxu0 0.0
    %911 = vmatpush1.msra.mxu0 0.0
    %912 = vmatprep.subr.mxu0 0.0
    %913 = vmatpush1.msra.mxu0 0.0
    %914 = vmatprep.subr.mxu0 0.0
    %915 = vmatpush1.msra.mxu0 0.0
    %916 = vmatprep.subr.mxu0 0.0
    %917 = vmatpush1.msra.mxu0 0.0
    %918 = vmatprep.subr.mxu0 0.0
    %919 = vmatpush1.msra.mxu0 0.0
    %920 = vmatprep.subr.mxu0 0.0
    %921 = vmatpush1.msra.mxu0 0.0
    %922 = vmatprep.subr.mxu0 0.0
    %923 = vmatpush1.msra.mxu0 0.0
    %924 = vmatprep.subr.mxu0 0.0
    %925 = vmatpush1.msra.mxu0 0.0
    %926 = vmatprep.subr.mxu0 0.0
    %927 = vmatpush1.msra.mxu0 0.0
    %928 = vmatprep.subr.mxu0 0.0
    %929 = vmatpush1.msra.mxu0 0.0
    %930 = vmatprep.subr.mxu0 0.0
    %931 = vmatpush1.msra.mxu0 0.0
    %932 = vmatprep.subr.mxu0 0.0
    %933 = vmatpush1.msra.mxu0 0.0
    %934 = vmatprep.subr.mxu0 0.0
    %935 = vmatpush1.msra.mxu0 0.0
    %936 = vmatprep.subr.mxu0 0.0
    %937 = vmatpush1.msra.mxu0 0.0
    %938 = vmatprep.subr.mxu0 0.0
    %939 = vmatpush1.msra.mxu0 0.0
    %940 = vmatprep.subr.mxu0 0.0
    %941 = vmatpush1.msra.mxu0 0.0
    %942 = vmatprep.subr.mxu0 0.0
    %943 = vmatpush1.msra.mxu0 0.0
    %944 = vmatprep.subr.mxu0 0.0
    %945 = vmatpush1.msra.mxu0 0.0
    %946 = vmatprep.subr.mxu0 0.0
    %947 = vmatpush1.msra.mxu0 0.0
    %948 = vmatprep.subr.mxu0 0.0
    %949 = vmatpush1.msra.mxu0 0.0
    %950 = vmatprep.subr.mxu0 0.0
    %951 = vmatpush1.msra.mxu0 0.0
    %952 = vmatprep.subr.mxu0 0.0
    %953 = vmatpush1.msra.mxu0 0.0
    %954 = vmatprep.subr.mxu0 0.0
    %955 = vmatpush1.msra.mxu0 0.0
    %956 = vmatprep.subr.mxu0 0.0
    %957 = vmatpush1.msra.mxu0 0.0
    %958 = vmatprep.subr.mxu0 0.0
    %959 = vmatpush1.msra.mxu0 0.0
    %960 = vmatprep.subr.mxu0 0.0
    %961 = vmatpush1.msra.mxu0 0.0
    %962 = vmatprep.subr.mxu0 0.0
    %963 = vmatpush1.msra.mxu0 0.0
    %964 = vmatprep.mubr.f32.mxu0 0.0
    %965 = vmatmul.mubr.f32.gmra.mrb[0].mxu0 %v895
    %v966 = vpop.f32.mrb[0].mxu0
    %v967 = vadd.f32 0.0, %v966
    %v968 = vpop.f32.mrb[0].mxu0
    %969 = vmatprep.mubr.f32.mxu0 0.0
    %970 = vmatmul.mubr.f32.gmra.mrb[0].mxu0 %v898
    %v971 = vpop.f32.mrb[0].mxu0
    %v972 = vadd.f32 0.0, %v971
    %v973 = vpop.f32.mrb[0].mxu0
    %974 = vdwg.mxu0
    %v975 = vld [vmem:[%s5] sm:$0xff]
    %v976 = vld [vmem:[%s5 + $0x8] sm:$0xff]
    %v977 = vld [vmem:[%s5 + $0x10] sm:$0xff]
    %v978 = vld [vmem:[%s5 + $0x18] sm:$0xff]
    %v979 = vld [vmem:[%s5 + $0x20] sm:$0xff]
    %v980 = vld [vmem:[%s5 + $0x28] sm:$0xff]
    %v981 = vld [vmem:[%s5 + $0x30] sm:$0xff]
    %v982 = vld [vmem:[%s5 + $0x38] sm:$0xff]
    %v983 = vmul.f32 %v724, %v975
    %v984 = vmul.f32 %v729, %v976
    %v985 = vmul.f32 %v805, %v977
    %v986 = vmul.f32 %v810, %v978
    %v987 = vmul.f32 %v886, %v979
    %v988 = vmul.f32 %v891, %v980
    %v989 = vmul.f32 %v967, %v981
    %v990 = vmul.f32 %v972, %v982
    %v995 = vrot.slane %v983, 4
    %v996 = vrot.slane %v985, 4
    %v997 = vrot.slane %v987, 4
    %v998 = vrot.slane %v989, 4
    %v1003 = vadd.f32 %v983, %v995
    %v1004 = vadd.f32 %v985, %v996
    %v1005 = vadd.f32 %v987, %v997
    %v1006 = vadd.f32 %v989, %v998
    %v1007 = vadd.f32 %v1003, %v984
    %v1008 = vadd.f32 %v1004, %v986
    %v1009 = vadd.f32 %v1005, %v988
    %v1010 = vadd.f32 %v1006, %v990
    %v1015 = vrot.slane %v984, 4
    %v1016 = vrot.slane %v986, 4
    %v1017 = vrot.slane %v988, 4
    %v1018 = vrot.slane %v990, 4
    %v1023 = vadd.f32 %v1007, %v1015
    %v1024 = vadd.f32 %v1008, %v1016
    %v1025 = vadd.f32 %v1009, %v1017
    %v1026 = vadd.f32 %v1010, %v1018
    %v1027 = vmul.f32 %v1023, %v1025
    %v1028 = vmul.f32 %v1024, %v1026
    %v1031 = vcombine.low %v1027, %v1028
    %v1033 = vsel %vm76, %v1031, 0.0
    %1034 = vadd.xlane.f32.xlu0 %v1033
    %v1035 = vpop.xlane.xlu0 %1034
    %v1036 = vrcp.pop 32.0
    %v1037 = vmul.f32 %v1035, %v1036
    %v1040 = vunpack.c.l.s4 839922192
    %v1041 = vunpack.c.0.s8 %v1040
    %v1042 = vlaneseq
    %v1043 = vshrl.u32 %v1042, 7
    %v1044 = vsub.s32 %v1041, %v1043
    %v1045 = vrot.slane %v1037, %v1044
    %v1047 = vunpack.c.l.s4 1985246804
    %v1048 = vunpack.c.0.s8 %v1047
    %v1049 = vlaneseq
    %v1050 = vshrl.u32 %v1049, 7
    %v1051 = vsub.s32 %v1048, %v1050
    %v1052 = vrot.slane %v1037, %v1051
    %v1055 = vsub.f32 %v1027, %v1045
    %v1056 = vsub.f32 %v1028, %v1052
    %v1057 = vmul.f32 %v1055, %v1055
    %v1058 = vmul.f32 %v1056, %v1056
    %v1061 = vcombine.low %v1057, %v1058
    %v1063 = vsel %vm76, %v1061, 0.0
    %1064 = vadd.xlane.f32.xlu0 %v1063
    %v1065 = vpop.xlane.xlu0 %1064
    %v1066 = vmul.f32 %v1065, %v1036
    %v1067 = vadd.f32 %v1066, 1e-05
    %v1068 = vrsqrt.pop %v1067
    %v1071 = vunpack.c.l.s4 839922192
    %v1072 = vunpack.c.0.s8 %v1071
    %v1073 = vlaneseq
    %v1074 = vshrl.u32 %v1073, 7
    %v1075 = vsub.s32 %v1072, %v1074
    %v1076 = vrot.slane %v1068, %v1075
    %v1078 = vunpack.c.l.s4 1985246804
    %v1079 = vunpack.c.0.s8 %v1078
    %v1080 = vlaneseq
    %v1081 = vshrl.u32 %v1080, 7
    %v1082 = vsub.s32 %v1079, %v1081
    %v1083 = vrot.slane %v1068, %v1082
    %v1086 = vmul.f32 %v1055, %v1076
    %v1087 = vmul.f32 %v1056, %v1083
    %v1088 = vld [vmem:[%s6] sm:$0xff]
    %v1089 = vld [vmem:[%s6 + $0x8] sm:$0xff]
    %v1090 = vld [vmem:[%s6 + $0x10] sm:$0xff]
    %v1091 = vld [vmem:[%s6 + $0x18] sm:$0xff]
    %v1092 = vld [vmem:[%s7] sm:$0x1]
    %v1094 = vlaneseq
    %v1095 = vshrl.u32 %v1094, 7
    %v1096 = vsub.s32 0, %v1095
    %v1097 = vrot.slane %v1092, %v1096
    %v1101 = vcombine.low %v1086, %v1087
    %v1102 = vsel %vm76, %v1101, 0
    %1104 = vmatprep.subr.mxu0 0.0
    %1105 = vmatpush1.msra.mxu0 %v1088
    %1106 = vmatprep.subr.mxu0 0.0
    %1107 = vmatpush1.msra.mxu0 %v1089
    %1108 = vmatprep.subr.mxu0 0.0
    %1109 = vmatpush1.msra.mxu0 %v1090
    %1110 = vmatprep.subr.mxu0 0.0
    %1111 = vmatpush1.msra.mxu0 %v1091
    %1112 = vmatprep.subr.mxu0 0.0
    %1113 = vmatpush1.msra.mxu0 0.0
    %1114 = vmatprep.subr.mxu0 0.0
    %1115 = vmatpush1.msra.mxu0 0.0
    %1116 = vmatprep.subr.mxu0 0.0
    %1117 = vmatpush1.msra.mxu0 0.0
    %1118 = vmatprep.subr.mxu0 0.0
    %1119 = vmatpush1.msra.mxu0 0.0
    %1120 = vmatprep.subr.mxu0 0.0
    %1121 = vmatpush1.msra.mxu0 0.0
    %1122 = vmatprep.subr.mxu0 0.0
    %1123 = vmatpush1.msra.mxu0 0.0
    %1124 = vmatprep.subr.mxu0 0.0
    %1125 = vmatpush1.msra.mxu0 0.0
    %1126 = vmatprep.subr.mxu0 0.0
    %1127 = vmatpush1.msra.mxu0 0.0
    %1128 = vmatprep.subr.mxu0 0.0
    %1129 = vmatpush1.msra.mxu0 0.0
    %1130 = vmatprep.subr.mxu0 0.0
    %1131 = vmatpush1.msra.mxu0 0.0
    %1132 = vmatprep.subr.mxu0 0.0
    %1133 = vmatpush1.msra.mxu0 0.0
    %1134 = vmatprep.subr.mxu0 0.0
    %1135 = vmatpush1.msra.mxu0 0.0
    %1136 = vmatprep.subr.mxu0 0.0
    %1137 = vmatpush1.msra.mxu0 0.0
    %1138 = vmatprep.subr.mxu0 0.0
    %1139 = vmatpush1.msra.mxu0 0.0
    %1140 = vmatprep.subr.mxu0 0.0
    %1141 = vmatpush1.msra.mxu0 0.0
    %1142 = vmatprep.subr.mxu0 0.0
    %1143 = vmatpush1.msra.mxu0 0.0
    %1144 = vmatprep.subr.mxu0 0.0
    %1145 = vmatpush1.msra.mxu0 0.0
    %1146 = vmatprep.subr.mxu0 0.0
    %1147 = vmatpush1.msra.mxu0 0.0
    %1148 = vmatprep.subr.mxu0 0.0
    %1149 = vmatpush1.msra.mxu0 0.0
    %1150 = vmatprep.subr.mxu0 0.0
    %1151 = vmatpush1.msra.mxu0 0.0
    %1152 = vmatprep.subr.mxu0 0.0
    %1153 = vmatpush1.msra.mxu0 0.0
    %1154 = vmatprep.subr.mxu0 0.0
    %1155 = vmatpush1.msra.mxu0 0.0
    %1156 = vmatprep.subr.mxu0 0.0
    %1157 = vmatpush1.msra.mxu0 0.0
    %1158 = vmatprep.subr.mxu0 0.0
    %1159 = vmatpush1.msra.mxu0 0.0
    %1160 = vmatprep.subr.mxu0 0.0
    %1161 = vmatpush1.msra.mxu0 0.0
    %1162 = vmatprep.subr.mxu0 0.0
    %1163 = vmatpush1.msra.mxu0 0.0
    %1164 = vmatprep.subr.mxu0 0.0
    %1165 = vmatpush1.msra.mxu0 0.0
    %1166 = vmatprep.subr.mxu0 0.0
    %1167 = vmatpush1.msra.mxu0 0.0
    %1168 = vmatprep.mubr.f32.mxu0 0.0
    %1169 = vmatmul.mubr.f32.gmra.mrb[0].mxu0 %v1102
    %v1170 = vpop.f32.mrb[0].mxu0
    %v1171 = vadd.f32 %v1097, %v1170
    %v1172 = vpop.f32.mrb[0].mxu0
    %1173 = vdwg.mxu0
    %v1174 = vld [vmem:[%s8] sm:$0xff]
    %v1175 = vld [vmem:[%s8 + $0x8] sm:$0xff]
    %v1176 = vld [vmem:[%s8 + $0x10] sm:$0xff]
    %v1177 = vld [vmem:[%s8 + $0x18] sm:$0xff]
    %v1178 = vld [vmem:[%s8 + $0x20] sm:$0xff]
    %v1179 = vld [vmem:[%s8 + $0x28] sm:$0xff]
    %v1180 = vld [vmem:[%s8 + $0x30] sm:$0xff]
    %v1181 = vld [vmem:[%s8 + $0x38] sm:$0xff]
    %vm1182 = vcmask 64512
    %v1184 = vsel %vm1182, %v1174, 0
    %v1187 = vsel %vm1182, %v1175, 0
    %v1190 = vsel %vm1182, %v1176, 0
    %v1193 = vsel %vm1182, %v1177, 0
    %v1196 = vsel %vm1182, %v1178, 0
    %v1199 = vsel %vm1182, %v1179, 0
    %v1202 = vsel %vm1182, %v1180, 0
    %v1205 = vsel %vm1182, %v1181, 0
    %1207 = vmatprep.subr.mxu0 0.0
    %1208 = vmatpush1.msra.mxu0 %v1171
    %1209 = vmatprep.subr.mxu0 0.0
    %1210 = vmatpush1.msra.mxu0 0.0
    %1211 = vmatprep.subr.mxu0 0.0
    %1212 = vmatpush1.msra.mxu0 0.0
    %1213 = vmatprep.subr.mxu0 0.0
    %1214 = vmatpush1.msra.mxu0 0.0
    %1215 = vmatprep.subr.mxu0 0.0
    %1216 = vmatpush1.msra.mxu0 0.0
    %1217 = vmatprep.subr.mxu0 0.0
    %1218 = vmatpush1.msra.mxu0 0.0
    %1219 = vmatprep.subr.mxu0 0.0
    %1220 = vmatpush1.msra.mxu0 0.0
    %1221 = vmatprep.subr.mxu0 0.0
    %1222 = vmatpush1.msra.mxu0 0.0
    %1223 = vmatprep.subr.mxu0 0.0
    %1224 = vmatpush1.msra.mxu0 0.0
    %1225 = vmatprep.subr.mxu0 0.0
    %1226 = vmatpush1.msra.mxu0 0.0
    %1227 = vmatprep.subr.mxu0 0.0
    %1228 = vmatpush1.msra.mxu0 0.0
    %1229 = vmatprep.subr.mxu0 0.0
    %1230 = vmatpush1.msra.mxu0 0.0
    %1231 = vmatprep.subr.mxu0 0.0
    %1232 = vmatpush1.msra.mxu0 0.0
    %1233 = vmatprep.subr.mxu0 0.0
    %1234 = vmatpush1.msra.mxu0 0.0
    %1235 = vmatprep.subr.mxu0 0.0
    %1236 = vmatpush1.msra.mxu0 0.0
    %1237 = vmatprep.subr.mxu0 0.0
    %1238 = vmatpush1.msra.mxu0 0.0
    %1239 = vmatprep.subr.mxu0 0.0
    %1240 = vmatpush1.msra.mxu0 0.0
    %1241 = vmatprep.subr.mxu0 0.0
    %1242 = vmatpush1.msra.mxu0 0.0
    %1243 = vmatprep.subr.mxu0 0.0
    %1244 = vmatpush1.msra.mxu0 0.0
    %1245 = vmatprep.subr.mxu0 0.0
    %1246 = vmatpush1.msra.mxu0 0.0
    %1247 = vmatprep.subr.mxu0 0.0
    %1248 = vmatpush1.msra.mxu0 0.0
    %1249 = vmatprep.subr.mxu0 0.0
    %1250 = vmatpush1.msra.mxu0 0.0
    %1251 = vmatprep.subr.mxu0 0.0
    %1252 = vmatpush1.msra.mxu0 0.0
    %1253 = vmatprep.subr.mxu0 0.0
    %1254 = vmatpush1.msra.mxu0 0.0
    %1255 = vmatprep.subr.mxu0 0.0
    %1256 = vmatpush1.msra.mxu0 0.0
    %1257 = vmatprep.subr.mxu0 0.0
    %1258 = vmatpush1.msra.mxu0 0.0
    %1259 = vmatprep.subr.mxu0 0.0
    %1260 = vmatpush1.msra.mxu0 0.0
    %1261 = vmatprep.subr.mxu0 0.0
    %1262 = vmatpush1.msra.mxu0 0.0
    %1263 = vmatprep.subr.mxu0 0.0
    %1264 = vmatpush1.msra.mxu0 0.0
    %1265 = vmatprep.subr.mxu0 0.0
    %1266 = vmatpush1.msra.mxu0 0.0
    %1267 = vmatprep.subr.mxu0 0.0
    %1268 = vmatpush1.msra.mxu0 0.0
    %1269 = vmatprep.subr.mxu0 0.0
    %1270 = vmatpush1.msra.mxu0 0.0
    %1271 = vmatprep.mubr.f32.mxu0 0.0
    %1272 = vmatmul.mubr.f32.gmra.mrb[0].mxu0 %v1184
    %v1273 = vpop.f32.mrb[0].mxu0
    %v1274 = vadd.f32 0.0, %v1273
    %v1275 = vpop.f32.mrb[0].mxu0
    %1276 = vmatprep.mubr.f32.mxu0 0.0
    %1277 = vmatmul.mubr.f32.gmra.mrb[0].mxu0 %v1187
    %v1278 = vpop.f32.mrb[0].mxu0
    %v1279 = vadd.f32 0.0, %v1278
    %v1280 = vpop.f32.mrb[0].mxu0
    %1281 = vmatprep.mubr.f32.mxu0 0.0
    %1282 = vmatmul.mubr.f32.gmra.mrb[0].mxu0 %v1190
    %v1283 = vpop.f32.mrb[0].mxu0
    %v1284 = vadd.f32 0.0, %v1283
    %v1285 = vpop.f32.mrb[0].mxu0
    %1286 = vmatprep.mubr.f32.mxu0 0.0
    %1287 = vmatmul.mubr.f32.gmra.mrb[0].mxu0 %v1193
    %v1288 = vpop.f32.mrb[0].mxu0
    %v1289 = vadd.f32 0.0, %v1288
    %v1290 = vpop.f32.mrb[0].mxu0
    %1291 = vmatprep.mubr.f32.mxu0 0.0
    %1292 = vmatmul.mubr.f32.gmra.mrb[0].mxu0 %v1196
    %v1293 = vpop.f32.mrb[0].mxu0
    %v1294 = vadd.f32 0.0, %v1293
    %v1295 = vpop.f32.mrb[0].mxu0
    %1296 = vmatprep.mubr.f32.mxu0 0.0
    %1297 = vmatmul.mubr.f32.gmra.mrb[0].mxu0 %v1199
    %v1298 = vpop.f32.mrb[0].mxu0
    %v1299 = vadd.f32 0.0, %v1298
    %v1300 = vpop.f32.mrb[0].mxu0
    %1301 = vmatprep.mubr.f32.mxu0 0.0
    %1302 = vmatmul.mubr.f32.gmra.mrb[0].mxu0 %v1202
    %v1303 = vpop.f32.mrb[0].mxu0
    %v1304 = vadd.f32 0.0, %v1303
    %v1305 = vpop.f32.mrb[0].mxu0
    %1306 = vmatprep.mubr.f32.mxu0 0.0
    %1307 = vmatmul.mubr.f32.gmra.mrb[0].mxu0 %v1205
    %v1308 = vpop.f32.mrb[0].mxu0
    %v1309 = vadd.f32 0.0, %v1308
    %v1310 = vpop.f32.mrb[0].mxu0
    %1311 = vdwg.mxu0
    %v1312 = vld [vmem:[%s0] sm:$0xff]
    %v1313 = vld [vmem:[%s0 + $0x8] sm:$0xff]
    %v1314 = vld [vmem:[%s0 + $0x10] sm:$0xff]
    %v1315 = vld [vmem:[%s0 + $0x18] sm:$0xff]
    %v1316 = vld [vmem:[%s0 + $0x20] sm:$0xff]
    %v1317 = vld [vmem:[%s0 + $0x28] sm:$0xff]
    %v1318 = vld [vmem:[%s0 + $0x30] sm:$0xff]
    %v1319 = vld [vmem:[%s0 + $0x38] sm:$0xff]
    %v1320 = vadd.f32 %v1312, %v1274
    %v1321 = vadd.f32 %v1313, %v1279
    %v1322 = vadd.f32 %v1314, %v1284
    %v1323 = vadd.f32 %v1315, %v1289
    %v1324 = vadd.f32 %v1316, %v1294
    %v1325 = vadd.f32 %v1317, %v1299
    %v1326 = vadd.f32 %v1318, %v1304
    %v1327 = vadd.f32 %v1319, %v1309
    %v1328 = vld [vmem:[%s9] sm:$0x1]
    %v1329 = vld [vmem:[%s10] sm:$0x1]
    %v1330 = vmul.f32 %v1320, %v1320
    %v1331 = vmul.f32 %v1321, %v1321
    %v1332 = vmul.f32 %v1322, %v1322
    %v1333 = vmul.f32 %v1323, %v1323
    %v1334 = vmul.f32 %v1324, %v1324
    %v1335 = vmul.f32 %v1325, %v1325
    %v1336 = vmul.f32 %v1326, %v1326
    %v1337 = vmul.f32 %v1327, %v1327
    %1346 = vrot.lane.b32.xlu0 %v1330, 32
    %v1347 = vpop.permute.xlu0 %1346
    %1348 = vrot.lane.b32.xlu0 %v1331, 32
    %v1349 = vpop.permute.xlu0 %1348
    %1350 = vrot.lane.b32.xlu0 %v1332, 32
    %v1351 = vpop.permute.xlu0 %1350
    %1352 = vrot.lane.b32.xlu0 %v1333, 32
    %v1353 = vpop.permute.xlu0 %1352
    %1354 = vrot.lane.b32.xlu0 %v1334, 32
    %v1355 = vpop.permute.xlu0 %1354
    %1356 = vrot.lane.b32.xlu0 %v1335, 32
    %v1357 = vpop.permute.xlu0 %1356
    %1358 = vrot.lane.b32.xlu0 %v1336, 32
    %v1359 = vpop.permute.xlu0 %1358
    %1360 = vrot.lane.b32.xlu0 %v1337, 32
    %v1361 = vpop.permute.xlu0 %1360
    %v1370 = vsel %vm76, %v1320, %v1347
    %v1371 = vsel %vm76, %v1321, %v1349
    %v1372 = vsel %vm76, %v1322, %v1351
    %v1373 = vsel %vm76, %v1323, %v1353
    %v1374 = vsel %vm76, %v1324, %v1355
    %v1375 = vsel %vm76, %v1325, %v1357
    %v1376 = vsel %vm76, %v1326, %v1359
    %v1377 = vsel %vm76, %v1327, %v1361
    %vm1378 = vcmask 523264
    %v1379 = vsel %vm1378, %v1370, 0.0
    %v1380 = vsel %vm1378, %v1371, 0.0
    %v1381 = vadd.f32 %v1379, %v1380
    %v1382 = vsel %vm1378, %v1372, 0.0
    %v1383 = vadd.f32 %v1381, %v1382
    %v1384 = vsel %vm1378, %v1373, 0.0
    %v1385 = vadd.f32 %v1383, %v1384
    %v1386 = vsel %vm1378, %v1374, 0.0
    %v1387 = vadd.f32 %v1385, %v1386
    %v1388 = vsel %vm1378, %v1375, 0.0
    %v1389 = vadd.f32 %v1387, %v1388
    %v1390 = vsel %vm1378, %v1376, 0.0
    %v1391 = vadd.f32 %v1389, %v1390
    %v1392 = vsel %vm1378, %v1377, 0.0
    %v1393 = vadd.f32 %v1391, %v1392
    %v1394 = vrot.slane %v1393, 4
    %v1395 = vadd.f32 %v1393, %v1394
    %v1396 = vrot.slane %v1395, 2
    %v1397 = vadd.f32 %v1395, %v1396
    %v1398 = vrot.slane %v1397, 1
    %v1399 = vadd.f32 %v1397, %v1398
    %v1400 = vrcp.pop 64.0
    %v1401 = vmul.f32 %v1399, %v1400
    %v1402 = vmul.f32 %v1401, %v1401
    %1404 = vrot.lane.b32.xlu0 %v1402, 32
    %v1405 = vpop.permute.xlu0 %1404
    %v1407 = vsub.f32 %v1401, %v1405
    %v1408 = vsub.f32 %v1320, %v1401
    %v1409 = vsub.f32 %v1321, %v1401
    %v1410 = vsub.f32 %v1322, %v1401
    %v1411 = vsub.f32 %v1323, %v1401
    %v1412 = vsub.f32 %v1324, %v1401
    %v1413 = vsub.f32 %v1325, %v1401
    %v1414 = vsub.f32 %v1326, %v1401
    %v1415 = vsub.f32 %v1327, %v1401
    %v1416 = vadd.f32 %v1407, 1e-05
    %v1417 = vrsqrt.pop %v1416
    %v1418 = vlaneseq
    %v1419 = vshrl.u32 %v1418, 7
    %v1420 = vsub.s32 0, %v1419
    %v1421 = vrot.slane %v1417, %v1420
    %1423 = vrot.lane.b32.xlu0 %v1421, 96
    %v1424 = vpop.permute.xlu0 %1423
    %v1426 = vmul.f32 %v1408, %v1424
    %v1427 = vmul.f32 %v1409, %v1424
    %v1428 = vmul.f32 %v1410, %v1424
    %v1429 = vmul.f32 %v1411, %v1424
    %v1430 = vmul.f32 %v1412, %v1424
    %v1431 = vmul.f32 %v1413, %v1424
    %v1432 = vmul.f32 %v1414, %v1424
    %v1433 = vmul.f32 %v1415, %v1424
    %v1435 = vlaneseq
    %v1436 = vshrl.u32 %v1435, 7
    %v1437 = vsub.s32 0, %v1436
    %v1438 = vrot.slane %v1328, %v1437
    %v1440 = vmul.f32 %v1426, %v1438
    %v1441 = vmul.f32 %v1427, %v1438
    %v1442 = vmul.f32 %v1428, %v1438
    %v1443 = vmul.f32 %v1429, %v1438
    %v1444 = vmul.f32 %v1430, %v1438
    %v1445 = vmul.f32 %v1431, %v1438
    %v1446 = vmul.f32 %v1432, %v1438
    %v1447 = vmul.f32 %v1433, %v1438
    %v1449 = vlaneseq
    %v1450 = vshrl.u32 %v1449, 7
    %v1451 = vsub.s32 0, %v1450
    %v1452 = vrot.slane %v1329, %v1451
    %v1454 = vadd.f32 %v1440, %v1452
    %v1455 = vadd.f32 %v1441, %v1452
    %v1456 = vadd.f32 %v1442, %v1452
    %v1457 = vadd.f32 %v1443, %v1452
    %v1458 = vadd.f32 %v1444, %v1452
    %v1459 = vadd.f32 %v1445, %v1452
    %v1460 = vadd.f32 %v1446, %v1452
    %v1461 = vadd.f32 %v1447, %v1452
    %v1462 = vld [vmem:[%s11] sm:$0xff]
    %v1463 = vld [vmem:[%s11 + $0x8] sm:$0xff]
    %v1464 = vld [vmem:[%s11 + $0x10] sm:$0xff]
    %v1465 = vld [vmem:[%s11 + $0x18] sm:$0xff]
    %v1466 = vld [vmem:[%s12] sm:$0x1]
    %v1468 = vlaneseq
    %v1469 = vshrl.u32 %v1468, 7
    %v1470 = vsub.s32 0, %v1469
    %v1471 = vrot.slane %v1466, %v1470
    %v1474 = vsel %vm76, %v1454, 0
    %v1477 = vsel %vm76, %v1455, 0
    %v1480 = vsel %vm76, %v1456, 0
    %v1483 = vsel %vm76, %v1457, 0
    %v1486 = vsel %vm76, %v1458, 0
    %v1489 = vsel %vm76, %v1459, 0
    %v1492 = vsel %vm76, %v1460, 0
    %v1495 = vsel %vm76, %v1461, 0
    %1497 = vmatprep.subr.mxu0 0.0
    %1498 = vmatpush1.msra.mxu0 %v1462
    %1499 = vmatprep.subr.mxu0 0.0
    %1500 = vmatpush1.msra.mxu0 %v1463
    %1501 = vmatprep.subr.mxu0 0.0
    %1502 = vmatpush1.msra.mxu0 %v1464
    %1503 = vmatprep.subr.mxu0 0.0
    %1504 = vmatpush1.msra.mxu0 %v1465
    %1505 = vmatprep.subr.mxu0 0.0
    %1506 = vmatpush1.msra.mxu0 0.0
    %1507 = vmatprep.subr.mxu0 0.0
    %1508 = vmatpush1.msra.mxu0 0.0
    %1509 = vmatprep.subr.mxu0 0.0
    %1510 = vmatpush1.msra.mxu0 0.0
    %1511 = vmatprep.subr.mxu0 0.0
    %1512 = vmatpush1.msra.mxu0 0.0
    %1513 = vmatprep.subr.mxu0 0.0
    %1514 = vmatpush1.msra.mxu0 0.0
    %1515 = vmatprep.subr.mxu0 0.0
    %1516 = vmatpush1.msra.mxu0 0.0
    %1517 = vmatprep.subr.mxu0 0.0
    %1518 = vmatpush1.msra.mxu0 0.0
    %1519 = vmatprep.subr.mxu0 0.0
    %1520 = vmatpush1.msra.mxu0 0.0
    %1521 = vmatprep.subr.mxu0 0.0
    %1522 = vmatpush1.msra.mxu0 0.0
    %1523 = vmatprep.subr.mxu0 0.0
    %1524 = vmatpush1.msra.mxu0 0.0
    %1525 = vmatprep.subr.mxu0 0.0
    %1526 = vmatpush1.msra.mxu0 0.0
    %1527 = vmatprep.subr.mxu0 0.0
    %1528 = vmatpush1.msra.mxu0 0.0
    %1529 = vmatprep.subr.mxu0 0.0
    %1530 = vmatpush1.msra.mxu0 0.0
    %1531 = vmatprep.subr.mxu0 0.0
    %1532 = vmatpush1.msra.mxu0 0.0
    %1533 = vmatprep.subr.mxu0 0.0
    %1534 = vmatpush1.msra.mxu0 0.0
    %1535 = vmatprep.subr.mxu0 0.0
    %1536 = vmatpush1.msra.mxu0 0.0
    %1537 = vmatprep.subr.mxu0 0.0
    %1538 = vmatpush1.msra.mxu0 0.0
    %1539 = vmatprep.subr.mxu0 0.0
    %1540 = vmatpush1.msra.mxu0 0.0
    %1541 = vmatprep.subr.mxu0 0.0
    %1542 = vmatpush1.msra.mxu0 0.0
    %1543 = vmatprep.subr.mxu0 0.0
    %1544 = vmatpush1.msra.mxu0 0.0
    %1545 = vmatprep.subr.mxu0 0.0
    %1546 = vmatpush1.msra.mxu0 0.0
    %1547 = vmatprep.subr.mxu0 0.0
    %1548 = vmatpush1.msra.mxu0 0.0
    %1549 = vmatprep.subr.mxu0 0.0
    %1550 = vmatpush1.msra.mxu0 0.0
    %1551 = vmatprep.subr.mxu0 0.0
    %1552 = vmatpush1.msra.mxu0 0.0
    %1553 = vmatprep.subr.mxu0 0.0
    %1554 = vmatpush1.msra.mxu0 0.0
    %1555 = vmatprep.subr.mxu0 0.0
    %1556 = vmatpush1.msra.mxu0 0.0
    %1557 = vmatprep.subr.mxu0 0.0
    %1558 = vmatpush1.msra.mxu0 0.0
    %1559 = vmatprep.subr.mxu0 0.0
    %1560 = vmatpush1.msra.mxu0 0.0
    %1561 = vmatprep.mubr.f32.mxu0 0.0
    %1562 = vmatmul.mubr.f32.gmra.mrb[0].mxu0 %v1474
    %v1563 = vpop.f32.mrb[0].mxu0
    %v1564 = vadd.f32 %v1471, %v1563
    %v1565 = vpop.f32.mrb[0].mxu0
    %1566 = vmatprep.mubr.f32.mxu0 0.0
    %1567 = vmatmul.mubr.f32.gmra.mrb[0].mxu0 %v1477
    %v1568 = vpop.f32.mrb[0].mxu0
    %v1569 = vadd.f32 %v1471, %v1568
    %v1570 = vpop.f32.mrb[0].mxu0
    %1571 = vmatprep.mubr.f32.mxu0 0.0
    %1572 = vmatmul.mubr.f32.gmra.mrb[0].mxu0 %v1480
    %v1573 = vpop.f32.mrb[0].mxu0
    %v1574 = vadd.f32 %v1471, %v1573
    %v1575 = vpop.f32.mrb[0].mxu0
    %1576 = vmatprep.mubr.f32.mxu0 0.0
    %1577 = vmatmul.mubr.f32.gmra.mrb[0].mxu0 %v1483
    %v1578 = vpop.f32.mrb[0].mxu0
    %v1579 = vadd.f32 %v1471, %v1578
    %v1580 = vpop.f32.mrb[0].mxu0
    %1581 = vmatprep.mubr.f32.mxu0 0.0
    %1582 = vmatmul.mubr.f32.gmra.mrb[0].mxu0 %v1486
    %v1583 = vpop.f32.mrb[0].mxu0
    %v1584 = vadd.f32 %v1471, %v1583
    %v1585 = vpop.f32.mrb[0].mxu0
    %1586 = vmatprep.mubr.f32.mxu0 0.0
    %1587 = vmatmul.mubr.f32.gmra.mrb[0].mxu0 %v1489
    %v1588 = vpop.f32.mrb[0].mxu0
    %v1589 = vadd.f32 %v1471, %v1588
    %v1590 = vpop.f32.mrb[0].mxu0
    %1591 = vmatprep.mubr.f32.mxu0 0.0
    %1592 = vmatmul.mubr.f32.gmra.mrb[0].mxu0 %v1492
    %v1593 = vpop.f32.mrb[0].mxu0
    %v1594 = vadd.f32 %v1471, %v1593
    %v1595 = vpop.f32.mrb[0].mxu0
    %1596 = vmatprep.mubr.f32.mxu0 0.0
    %1597 = vmatmul.mubr.f32.gmra.mrb[0].mxu0 %v1495
    %v1598 = vpop.f32.mrb[0].mxu0
    %v1599 = vadd.f32 %v1471, %v1598
    %v1600 = vpop.f32.mrb[0].mxu0
    %1601 = vdwg.mxu0
    %v1602 = vmul.f32 %v1564, 0.5
    %v1603 = vmul.f32 %v1569, 0.5
    %v1604 = vmul.f32 %v1574, 0.5
    %v1605 = vmul.f32 %v1579, 0.5
    %v1606 = vmul.f32 %v1584, 0.5
    %v1607 = vmul.f32 %v1589, 0.5
    %v1608 = vmul.f32 %v1594, 0.5
    %v1609 = vmul.f32 %v1599, 0.5
    %v1610 = vmul.f32 %v1564, 0.70710677
    %v1611 = vmul.f32 %v1569, 0.70710677
    %v1612 = vmul.f32 %v1574, 0.70710677
    %v1613 = vmul.f32 %v1579, 0.70710677
    %v1614 = vmul.f32 %v1584, 0.70710677
    %v1615 = vmul.f32 %v1589, 0.70710677
    %v1616 = vmul.f32 %v1594, 0.70710677
    %v1617 = vmul.f32 %v1599, 0.70710677
    %v1618 = vand.u32 2147483647, %v1610
    %v1619 = vand.u32 2147483647, %v1611
    %v1620 = vand.u32 2147483647, %v1612
    %v1621 = vand.u32 2147483647, %v1613
    %v1622 = vand.u32 2147483647, %v1614
    %v1623 = vand.u32 2147483647, %v1615
    %v1624 = vand.u32 2147483647, %v1616
    %v1625 = vand.u32 2147483647, %v1617
    %v1626 = vmul.f32 %v1618, 0.3275911
    %v1627 = vmul.f32 %v1619, 0.3275911
    %v1628 = vmul.f32 %v1620, 0.3275911
    %v1629 = vmul.f32 %v1621, 0.3275911
    %v1630 = vmul.f32 %v1622, 0.3275911
    %v1631 = vmul.f32 %v1623, 0.3275911
    %v1632 = vmul.f32 %v1624, 0.3275911
    %v1633 = vmul.f32 %v1625, 0.3275911
    %v1634 = vadd.f32 %v1626, 1.0
    %v1635 = vadd.f32 %v1627, 1.0
    %v1636 = vadd.f32 %v1628, 1.0
    %v1637 = vadd.f32 %v1629, 1.0
    %v1638 = vadd.f32 %v1630, 1.0
    %v1639 = vadd.f32 %v1631, 1.0
    %v1640 = vadd.f32 %v1632, 1.0
    %v1641 = vadd.f32 %v1633, 1.0
    %v1642 = vrcp.pop %v1634
    %v1643 = vrcp.pop %v1635
    %v1644 = vrcp.pop %v1636
    %v1645 = vrcp.pop %v1637
    %v1646 = vrcp.pop %v1638
    %v1647 = vrcp.pop %v1639
    %v1648 = vrcp.pop %v1640
    %v1649 = vrcp.pop %v1641
    %v1650 = vmul.f32 %v1642, 1.0614054
    %v1651 = vmul.f32 %v1643, 1.0614054
    %v1652 = vmul.f32 %v1644, 1.0614054
    %v1653 = vmul.f32 %v1645, 1.0614054
    %v1654 = vmul.f32 %v1646, 1.0614054
    %v1655 = vmul.f32 %v1647, 1.0614054
    %v1656 = vmul.f32 %v1648, 1.0614054
    %v1657 = vmul.f32 %v1649, 1.0614054
    %v1658 = vadd.f32 %v1650, -1.4531521
    %v1659 = vadd.f32 %v1651, -1.4531521
    %v1660 = vadd.f32 %v1652, -1.4531521
    %v1661 = vadd.f32 %v1653, -1.4531521
    %v1662 = vadd.f32 %v1654, -1.4531521
    %v1663 = vadd.f32 %v1655, -1.4531521
    %v1664 = vadd.f32 %v1656, -1.4531521
    %v1665 = vadd.f32 %v1657, -1.4531521
    %v1666 = vmul.f32 %v1658, %v1642
    %v1667 = vmul.f32 %v1659, %v1643
    %v1668 = vmul.f32 %v1660, %v1644
    %v1669 = vmul.f32 %v1661, %v1645
    %v1670 = vmul.f32 %v1662, %v1646
    %v1671 = vmul.f32 %v1663, %v1647
    %v1672 = vmul.f32 %v1664, %v1648
    %v1673 = vmul.f32 %v1665, %v1649
    %v1674 = vadd.f32 %v1666, 1.4214138
    %v1675 = vadd.f32 %v1667, 1.4214138
    %v1676 = vadd.f32 %v1668, 1.4214138
    %v1677 = vadd.f32 %v1669, 1.4214138
    %v1678 = vadd.f32 %v1670, 1.4214138
    %v1679 = vadd.f32 %v1671, 1.4214138
    %v1680 = vadd.f32 %v1672, 1.4214138
    %v1681 = vadd.f32 %v1673, 1.4214138
    %v1682 = vmul.f32 %v1674, %v1642
    %v1683 = vmul.f32 %v1675, %v1643
    %v1684 = vmul.f32 %v1676, %v1644
    %v1685 = vmul.f32 %v1677, %v1645
    %v1686 = vmul.f32 %v1678, %v1646
    %v1687 = vmul.f32 %v1679, %v1647
    %v1688 = vmul.f32 %v1680, %v1648
    %v1689 = vmul.f32 %v1681, %v1649
    %v1690 = vadd.f32 %v1682, -0.28449672
    %v1691 = vadd.f32 %v1683, -0.28449672
    %v1692 = vadd.f32 %v1684, -0.28449672
    %v1693 = vadd.f32 %v1685, -0.28449672
    %v1694 = vadd.f32 %v1686, -0.28449672
    %v1695 = vadd.f32 %v1687, -0.28449672
    %v1696 = vadd.f32 %v1688, -0.28449672
    %v1697 = vadd.f32 %v1689, -0.28449672
    %v1698 = vmul.f32 %v1690, %v1642
    %v1699 = vmul.f32 %v1691, %v1643
    %v1700 = vmul.f32 %v1692, %v1644
    %v1701 = vmul.f32 %v1693, %v1645
    %v1702 = vmul.f32 %v1694, %v1646
    %v1703 = vmul.f32 %v1695, %v1647
    %v1704 = vmul.f32 %v1696, %v1648
    %v1705 = vmul.f32 %v1697, %v1649
    %v1706 = vadd.f32 %v1698, 0.2548296
    %v1707 = vadd.f32 %v1699, 0.2548296
    %v1708 = vadd.f32 %v1700, 0.2548296
    %v1709 = vadd.f32 %v1701, 0.2548296
    %v1710 = vadd.f32 %v1702, 0.2548296
    %v1711 = vadd.f32 %v1703, 0.2548296
    %v1712 = vadd.f32 %v1704, 0.2548296
    %v1713 = vadd.f32 %v1705, 0.2548296
    %v1714 = vmul.f32 %v1706, %v1642
    %v1715 = vmul.f32 %v1707, %v1643
    %v1716 = vmul.f32 %v1708, %v1644
    %v1717 = vmul.f32 %v1709, %v1645
    %v1718 = vmul.f32 %v1710, %v1646
    %v1719 = vmul.f32 %v1711, %v1647
    %v1720 = vmul.f32 %v1712, %v1648
    %v1721 = vmul.f32 %v1713, %v1649
    %v1722 = vsub.f32 0.0, %v1618
    %v1723 = vsub.f32 0.0, %v1619
    %v1724 = vsub.f32 0.0, %v1620
    %v1725 = vsub.f32 0.0, %v1621
    %v1726 = vsub.f32 0.0, %v1622
    %v1727 = vsub.f32 0.0, %v1623
    %v1728 = vsub.f32 0.0, %v1624
    %v1729 = vsub.f32 0.0, %v1625
    %v1730 = vmul.f32 %v1722, %v1618
    %v1731 = vmul.f32 %v1723, %v1619
    %v1732 = vmul.f32 %v1724, %v1620
    %v1733 = vmul.f32 %v1725, %v1621
    %v1734 = vmul.f32 %v1726, %v1622
    %v1735 = vmul.f32 %v1727, %v1623
    %v1736 = vmul.f32 %v1728, %v1624
    %v1737 = vmul.f32 %v1729, %v1625
    %v1738 = vmul.f32 %v1730, 1.442695
    %v1739 = vpow.pop %v1738
    %v1740 = vmul.f32 %v1731, 1.442695
    %v1741 = vpow.pop %v1740
    %v1742 = vmul.f32 %v1732, 1.442695
    %v1743 = vpow.pop %v1742
    %v1744 = vmul.f32 %v1733, 1.442695
    %v1745 = vpow.pop %v1744
    %v1746 = vmul.f32 %v1734, 1.442695
    %v1747 = vpow.pop %v1746
    %v1748 = vmul.f32 %v1735, 1.442695
    %v1749 = vpow.pop %v1748
    %v1750 = vmul.f32 %v1736, 1.442695
    %v1751 = vpow.pop %v1750
    %v1752 = vmul.f32 %v1737, 1.442695
    %v1753 = vpow.pop %v1752
    %v1754 = vmul.f32 %v1714, %v1739
    %v1755 = vmul.f32 %v1715, %v1741
    %v1756 = vmul.f32 %v1716, %v1743
    %v1757 = vmul.f32 %v1717, %v1745
    %v1758 = vmul.f32 %v1718, %v1747
    %v1759 = vmul.f32 %v1719, %v1749
    %v1760 = vmul.f32 %v1720, %v1751
    %v1761 = vmul.f32 %v1721, %v1753
    %v1762 = vsub.f32 1.0, %v1754
    %v1763 = vsub.f32 1.0, %v1755
    %v1764 = vsub.f32 1.0, %v1756
    %v1765 = vsub.f32 1.0, %v1757
    %v1766 = vsub.f32 1.0, %v1758
    %v1767 = vsub.f32 1.0, %v1759
    %v1768 = vsub.f32 1.0, %v1760
    %v1769 = vsub.f32 1.0, %v1761
    %vm1770 = vcmp.ge.f32.partialorder %v1610, 0.0
    %vm1771 = vcmp.ge.f32.partialorder %v1611, 0.0
    %vm1772 = vcmp.ge.f32.partialorder %v1612, 0.0
    %vm1773 = vcmp.ge.f32.partialorder %v1613, 0.0
    %vm1774 = vcmp.ge.f32.partialorder %v1614, 0.0
    %vm1775 = vcmp.ge.f32.partialorder %v1615, 0.0
    %vm1776 = vcmp.ge.f32.partialorder %v1616, 0.0
    %vm1777 = vcmp.ge.f32.partialorder %v1617, 0.0
    %v1778 = vsub.f32 0.0, %v1762
    %v1779 = vsub.f32 0.0, %v1763
    %v1780 = vsub.f32 0.0, %v1764
    %v1781 = vsub.f32 0.0, %v1765
    %v1782 = vsub.f32 0.0, %v1766
    %v1783 = vsub.f32 0.0, %v1767
    %v1784 = vsub.f32 0.0, %v1768
    %v1785 = vsub.f32 0.0, %v1769
    %v1786 = vsel %vm1770, %v1762, %v1778
    %v1787 = vsel %vm1771, %v1763, %v1779
    %v1788 = vsel %vm1772, %v1764, %v1780
    %v1789 = vsel %vm1773, %v1765, %v1781
    %v1790 = vsel %vm1774, %v1766, %v1782
    %v1791 = vsel %vm1775, %v1767, %v1783
    %v1792 = vsel %vm1776, %v1768, %v1784
    %v1793 = vsel %vm1777, %v1769, %v1785
    %v1794 = vadd.f32 %v1786, 1.0
    %v1795 = vadd.f32 %v1787, 1.0
    %v1796 = vadd.f32 %v1788, 1.0
    %v1797 = vadd.f32 %v1789, 1.0
    %v1798 = vadd.f32 %v1790, 1.0
    %v1799 = vadd.f32 %v1791, 1.0
    %v1800 = vadd.f32 %v1792, 1.0
    %v1801 = vadd.f32 %v1793, 1.0
    %v1802 = vmul.f32 %v1602, %v1794
    %v1803 = vmul.f32 %v1603, %v1795
    %v1804 = vmul.f32 %v1604, %v1796
    %v1805 = vmul.f32 %v1605, %v1797
    %v1806 = vmul.f32 %v1606, %v1798
    %v1807 = vmul.f32 %v1607, %v1799
    %v1808 = vmul.f32 %v1608, %v1800
    %v1809 = vmul.f32 %v1609, %v1801
    %v1810 = vld [vmem:[%s13] sm:$0xff]
    %v1811 = vld [vmem:[%s13 + $0x8] sm:$0xff]
    %v1812 = vld [vmem:[%s13 + $0x10] sm:$0xff]
    %v1813 = vld [vmem:[%s13 + $0x18] sm:$0xff]
    %v1814 = vld [vmem:[%s13 + $0x20] sm:$0xff]
    %v1815 = vld [vmem:[%s13 + $0x28] sm:$0xff]
    %v1816 = vld [vmem:[%s13 + $0x30] sm:$0xff]
    %v1817 = vld [vmem:[%s13 + $0x38] sm:$0xff]
    %v1818 = vld [vmem:[%s14] sm:$0x1]
    %v1820 = vlaneseq
    %v1821 = vshrl.u32 %v1820, 7
    %v1822 = vsub.s32 0, %v1821
    %v1823 = vrot.slane %v1818, %v1822
    %v1826 = vsel %vm1378, %v1802, 0
    %v1829 = vsel %vm1378, %v1803, 0
    %v1832 = vsel %vm1378, %v1804, 0
    %v1835 = vsel %vm1378, %v1805, 0
    %v1838 = vsel %vm1378, %v1806, 0
    %v1841 = vsel %vm1378, %v1807, 0
    %v1844 = vsel %vm1378, %v1808, 0
    %v1847 = vsel %vm1378, %v1809, 0
    %1849 = vmatprep.subr.mxu0 0.0
    %1850 = vmatpush1.msra.mxu0 %v1810
    %1851 = vmatprep.subr.mxu0 0.0
    %1852 = vmatpush1.msra.mxu0 %v1811
    %1853 = vmatprep.subr.mxu0 0.0
    %1854 = vmatpush1.msra.mxu0 %v1812
    %1855 = vmatprep.subr.mxu0 0.0
    %1856 = vmatpush1.msra.mxu0 %v1813
    %1857 = vmatprep.subr.mxu0 0.0
    %1858 = vmatpush1.msra.mxu0 %v1814
    %1859 = vmatprep.subr.mxu0 0.0
    %1860 = vmatpush1.msra.mxu0 %v1815
    %1861 = vmatprep.subr.mxu0 0.0
    %1862 = vmatpush1.msra.mxu0 %v1816
    %1863 = vmatprep.subr.mxu0 0.0
    %1864 = vmatpush1.msra.mxu0 %v1817
    %1865 = vmatprep.subr.mxu0 0.0
    %1866 = vmatpush1.msra.mxu0 0.0
    %1867 = vmatprep.subr.mxu0 0.0
    %1868 = vmatpush1.msra.mxu0 0.0
    %1869 = vmatprep.subr.mxu0 0.0
    %1870 = vmatpush1.msra.mxu0 0.0
    %1871 = vmatprep.subr.mxu0 0.0
    %1872 = vmatpush1.msra.mxu0 0.0
    %1873 = vmatprep.subr.mxu0 0.0
    %1874 = vmatpush1.msra.mxu0 0.0
    %1875 = vmatprep.subr.mxu0 0.0
    %1876 = vmatpush1.msra.mxu0 0.0
    %1877 = vmatprep.subr.mxu0 0.0
    %1878 = vmatpush1.msra.mxu0 0.0
    %1879 = vmatprep.subr.mxu0 0.0
    %1880 = vmatpush1.msra.mxu0 0.0
    %1881 = vmatprep.subr.mxu0 0.0
    %1882 = vmatpush1.msra.mxu0 0.0
    %1883 = vmatprep.subr.mxu0 0.0
    %1884 = vmatpush1.msra.mxu0 0.0
    %1885 = vmatprep.subr.mxu0 0.0
    %1886 = vmatpush1.msra.mxu0 0.0
    %1887 = vmatprep.subr.mxu0 0.0
    %1888 = vmatpush1.msra.mxu0 0.0
    %1889 = vmatprep.subr.mxu0 0.0
    %1890 = vmatpush1.msra.mxu0 0.0
    %1891 = vmatprep.subr.mxu0 0.0
    %1892 = vmatpush1.msra.mxu0 0.0
    %1893 = vmatprep.subr.mxu0 0.0
    %1894 = vmatpush1.msra.mxu0 0.0
    %1895 = vmatprep.subr.mxu0 0.0
    %1896 = vmatpush1.msra.mxu0 0.0
    %1897 = vmatprep.subr.mxu0 0.0
    %1898 = vmatpush1.msra.mxu0 0.0
    %1899 = vmatprep.subr.mxu0 0.0
    %1900 = vmatpush1.msra.mxu0 0.0
    %1901 = vmatprep.subr.mxu0 0.0
    %1902 = vmatpush1.msra.mxu0 0.0
    %1903 = vmatprep.subr.mxu0 0.0
    %1904 = vmatpush1.msra.mxu0 0.0
    %1905 = vmatprep.subr.mxu0 0.0
    %1906 = vmatpush1.msra.mxu0 0.0
    %1907 = vmatprep.subr.mxu0 0.0
    %1908 = vmatpush1.msra.mxu0 0.0
    %1909 = vmatprep.subr.mxu0 0.0
    %1910 = vmatpush1.msra.mxu0 0.0
    %1911 = vmatprep.subr.mxu0 0.0
    %1912 = vmatpush1.msra.mxu0 0.0
    %1913 = vmatprep.mubr.f32.mxu0 0.0
    %1914 = vmatmul.mubr.f32.gmra.mrb[0].mxu0 %v1826
    %v1915 = vpop.f32.mrb[0].mxu0
    %v1916 = vadd.f32 %v1823, %v1915
    %v1917 = vpop.f32.mrb[0].mxu0
    %1918 = vmatprep.mubr.f32.mxu0 0.0
    %1919 = vmatmul.mubr.f32.gmra.mrb[0].mxu0 %v1829
    %v1920 = vpop.f32.mrb[0].mxu0
    %v1921 = vadd.f32 %v1823, %v1920
    %v1922 = vpop.f32.mrb[0].mxu0
    %1923 = vmatprep.mubr.f32.mxu0 0.0
    %1924 = vmatmul.mubr.f32.gmra.mrb[0].mxu0 %v1832
    %v1925 = vpop.f32.mrb[0].mxu0
    %v1926 = vadd.f32 %v1823, %v1925
    %v1927 = vpop.f32.mrb[0].mxu0
    %1928 = vmatprep.mubr.f32.mxu0 0.0
    %1929 = vmatmul.mubr.f32.gmra.mrb[0].mxu0 %v1835
    %v1930 = vpop.f32.mrb[0].mxu0
    %v1931 = vadd.f32 %v1823, %v1930
    %v1932 = vpop.f32.mrb[0].mxu0
    %1933 = vmatprep.mubr.f32.mxu0 0.0
    %1934 = vmatmul.mubr.f32.gmra.mrb[0].mxu0 %v1838
    %v1935 = vpop.f32.mrb[0].mxu0
    %v1936 = vadd.f32 %v1823, %v1935
    %v1937 = vpop.f32.mrb[0].mxu0
    %1938 = vmatprep.mubr.f32.mxu0 0.0
    %1939 = vmatmul.mubr.f32.gmra.mrb[0].mxu0 %v1841
    %v1940 = vpop.f32.mrb[0].mxu0
    %v1941 = vadd.f32 %v1823, %v1940
    %v1942 = vpop.f32.mrb[0].mxu0
    %1943 = vmatprep.mubr.f32.mxu0 0.0
    %1944 = vmatmul.mubr.f32.gmra.mrb[0].mxu0 %v1844
    %v1945 = vpop.f32.mrb[0].mxu0
    %v1946 = vadd.f32 %v1823, %v1945
    %v1947 = vpop.f32.mrb[0].mxu0
    %1948 = vmatprep.mubr.f32.mxu0 0.0
    %1949 = vmatmul.mubr.f32.gmra.mrb[0].mxu0 %v1847
    %v1950 = vpop.f32.mrb[0].mxu0
    %v1951 = vadd.f32 %v1823, %v1950
    %v1952 = vpop.f32.mrb[0].mxu0
    %1953 = vdwg.mxu0
    %v1954 = vadd.f32 %v1454, %v1916
    %v1955 = vadd.f32 %v1455, %v1921
    %v1956 = vadd.f32 %v1456, %v1926
    %v1957 = vadd.f32 %v1457, %v1931
    %v1958 = vadd.f32 %v1458, %v1936
    %v1959 = vadd.f32 %v1459, %v1941
    %v1960 = vadd.f32 %v1460, %v1946
    %v1961 = vadd.f32 %v1461, %v1951
    %v1962 = vld [vmem:[%s15] sm:$0x1]
    %v1963 = vld [vmem:[%s16] sm:$0x1]
    %v1964 = vmul.f32 %v1954, %v1954
    %v1965 = vmul.f32 %v1955, %v1955
    %v1966 = vmul.f32 %v1956, %v1956
    %v1967 = vmul.f32 %v1957, %v1957
    %v1968 = vmul.f32 %v1958, %v1958
    %v1969 = vmul.f32 %v1959, %v1959
    %v1970 = vmul.f32 %v1960, %v1960
    %v1971 = vmul.f32 %v1961, %v1961
    %1980 = vrot.lane.b32.xlu0 %v1964, 32
    %v1981 = vpop.permute.xlu0 %1980
    %1982 = vrot.lane.b32.xlu0 %v1965, 32
    %v1983 = vpop.permute.xlu0 %1982
    %1984 = vrot.lane.b32.xlu0 %v1966, 32
    %v1985 = vpop.permute.xlu0 %1984
    %1986 = vrot.lane.b32.xlu0 %v1967, 32
    %v1987 = vpop.permute.xlu0 %1986
    %1988 = vrot.lane.b32.xlu0 %v1968, 32
    %v1989 = vpop.permute.xlu0 %1988
    %1990 = vrot.lane.b32.xlu0 %v1969, 32
    %v1991 = vpop.permute.xlu0 %1990
    %1992 = vrot.lane.b32.xlu0 %v1970, 32
    %v1993 = vpop.permute.xlu0 %1992
    %1994 = vrot.lane.b32.xlu0 %v1971, 32
    %v1995 = vpop.permute.xlu0 %1994
    %v2004 = vsel %vm76, %v1954, %v1981
    %v2005 = vsel %vm76, %v1955, %v1983
    %v2006 = vsel %vm76, %v1956, %v1985
    %v2007 = vsel %vm76, %v1957, %v1987
    %v2008 = vsel %vm76, %v1958, %v1989
    %v2009 = vsel %vm76, %v1959, %v1991
    %v2010 = vsel %vm76, %v1960, %v1993
    %v2011 = vsel %vm76, %v1961, %v1995
    %v2012 = vsel %vm1378, %v2004, 0.0
    %v2013 = vsel %vm1378, %v2005, 0.0
    %v2014 = vadd.f32 %v2012, %v2013
    %v2015 = vsel %vm1378, %v2006, 0.0
    %v2016 = vadd.f32 %v2014, %v2015
    %v2017 = vsel %vm1378, %v2007, 0.0
    %v2018 = vadd.f32 %v2016, %v2017
    %v2019 = vsel %vm1378, %v2008, 0.0
    %v2020 = vadd.f32 %v2018, %v2019
    %v2021 = vsel %vm1378, %v2009, 0.0
    %v2022 = vadd.f32 %v2020, %v2021
    %v2023 = vsel %vm1378, %v2010, 0.0
    %v2024 = vadd.f32 %v2022, %v2023
    %v2025 = vsel %vm1378, %v2011, 0.0
    %v2026 = vadd.f32 %v2024, %v2025
    %v2027 = vrot.slane %v2026, 4
    %v2028 = vadd.f32 %v2026, %v2027
    %v2029 = vrot.slane %v2028, 2
    %v2030 = vadd.f32 %v2028, %v2029
    %v2031 = vrot.slane %v2030, 1
    %v2032 = vadd.f32 %v2030, %v2031
    %v2033 = vmul.f32 %v2032, %v1400
    %v2034 = vmul.f32 %v2033, %v2033
    %2036 = vrot.lane.b32.xlu0 %v2034, 32
    %v2037 = vpop.permute.xlu0 %2036
    %v2039 = vsub.f32 %v2033, %v2037
    %v2040 = vsub.f32 %v1954, %v2033
    %v2041 = vsub.f32 %v1955, %v2033
    %v2042 = vsub.f32 %v1956, %v2033
    %v2043 = vsub.f32 %v1957, %v2033
    %v2044 = vsub.f32 %v1958, %v2033
    %v2045 = vsub.f32 %v1959, %v2033
    %v2046 = vsub.f32 %v1960, %v2033
    %v2047 = vsub.f32 %v1961, %v2033
    %v2048 = vadd.f32 %v2039, 1e-05
    %v2049 = vrsqrt.pop %v2048
    %v2050 = vlaneseq
    %v2051 = vshrl.u32 %v2050, 7
    %v2052 = vsub.s32 0, %v2051
    %v2053 = vrot.slane %v2049, %v2052
    %2055 = vrot.lane.b32.xlu0 %v2053, 96
    %v2056 = vpop.permute.xlu0 %2055
    %v2058 = vmul.f32 %v2040, %v2056
    %v2059 = vmul.f32 %v2041, %v2056
    %v2060 = vmul.f32 %v2042, %v2056
    %v2061 = vmul.f32 %v2043, %v2056
    %v2062 = vmul.f32 %v2044, %v2056
    %v2063 = vmul.f32 %v2045, %v2056
    %v2064 = vmul.f32 %v2046, %v2056
    %v2065 = vmul.f32 %v2047, %v2056
    %v2067 = vlaneseq
    %v2068 = vshrl.u32 %v2067, 7
    %v2069 = vsub.s32 0, %v2068
    %v2070 = vrot.slane %v1962, %v2069
    %v2072 = vmul.f32 %v2058, %v2070
    %v2073 = vmul.f32 %v2059, %v2070
    %v2074 = vmul.f32 %v2060, %v2070
    %v2075 = vmul.f32 %v2061, %v2070
    %v2076 = vmul.f32 %v2062, %v2070
    %v2077 = vmul.f32 %v2063, %v2070
    %v2078 = vmul.f32 %v2064, %v2070
    %v2079 = vmul.f32 %v2065, %v2070
    %v2081 = vlaneseq
    %v2082 = vshrl.u32 %v2081, 7
    %v2083 = vsub.s32 0, %v2082
    %v2084 = vrot.slane %v1963, %v2083
    %v2086 = vadd.f32 %v2072, %v2084
    %v2087 = vadd.f32 %v2073, %v2084
    %v2088 = vadd.f32 %v2074, %v2084
    %v2089 = vadd.f32 %v2075, %v2084
    %v2090 = vadd.f32 %v2076, %v2084
    %v2091 = vadd.f32 %v2077, %v2084
    %v2092 = vadd.f32 %v2078, %v2084
    %v2093 = vadd.f32 %v2079, %v2084
    %2094 = vst.msk [vmem:[#allocation2] sm:$0xff] %vm76, %v2086
    %2095 = vst.msk [vmem:[#allocation2 + $0x8] sm:$0xff] %vm76, %v2087
    %2096 = vst.msk [vmem:[#allocation2 + $0x10] sm:$0xff] %vm76, %v2088
    %2097 = vst.msk [vmem:[#allocation2 + $0x18] sm:$0xff] %vm76, %v2089
    %2098 = vst.msk [vmem:[#allocation2 + $0x20] sm:$0xff] %vm76, %v2090
    %2099 = vst.msk [vmem:[#allocation2 + $0x28] sm:$0xff] %vm76, %v2091
    %2100 = vst.msk [vmem:[#allocation2 + $0x30] sm:$0xff] %vm76, %v2092
    %2101 = vst.msk [vmem:[#allocation2 + $0x38] sm:$0xff] %vm76, %v2093
    // Predicated region
    $region70: #{mapped_tst_cross_encoder_layer.1} parent=1 // pred_check
      _
    $region71: #{mapped_tst_cross_encoder_layer.1} parent=1 // pred_check_branch
      %2103 = sbr.rel (0) target = $region73
    $region72: #{mapped_tst_cross_encoder_layer.1} parent=1 // pred_region
      %s2105 = ssub.s32 1024, 1024
      %2106 = vsyncadd [#allocation3], %s2105
      %s2107 = sshll.u32 [#allocation2], 4
      %s2108 = int_to_ptr.vmem [resolvable:$true] %s2107
      %2113 = dma.vmem_to_hbm [thread:$0]  %s2108, 1024, %s17, [#allocation3], 128, 128, 8
    $region73: #{mapped_tst_cross_encoder_layer.1} parent=1 // pred_fallthru
      _
    // Predicated region
    $region74: #{mapped_tst_cross_encoder_layer.1} parent=1 // pred_check
      _
    $region75: #{mapped_tst_cross_encoder_layer.1} parent=1 // pred_check_branch
      %2115 = sbr.rel (0) target = $region77
    $region76: #{mapped_tst_cross_encoder_layer.1} parent=1 // pred_region
      %2116 = dma.done [#allocation3], 1024
    $region77: #{mapped_tst_cross_encoder_layer.1} parent=1 // pred_fallthru
      _
    %2117 = vsyncpa [#allocation3], 1

</llo_original>
